<compile_context>
chip_gen: v6e
topology: v6e:2x2x1
jax: 0.10.0
libtpu: 0.0.40
codegen_flags: <defaults>
</compile_context>

<pallas_src>
import numpy as np
import jax
import jax.numpy as jnp
from jax.experimental import pallas as pl
from jax.experimental.pallas import tpu as pltpu


def _round_up(x, m):
    return ((x + m - 1) // m) * m


def _vmem_cap_bytes():
    """Physical VMEM per TensorCore minus 16 MiB headroom (≈48 MiB on v7x,
    ≈112 MiB on v5e/v6e); conservative fallback if the query fails."""
    try:
        phys = int(pltpu.get_tpu_info().vmem_capacity_bytes)
    except Exception:
        phys = 64 << 20
    return max(phys - (16 << 20), 32 << 20)


def _clamp_vmem(nbytes):
    return int(min(_vmem_cap_bytes(), max(int(nbytes), 16 << 20)))


# ---------------------------------------------------------------------------
# Phase 1: edge MLP + lane-dense mean aggregation, streamed over edge tiles.
# ---------------------------------------------------------------------------
def edge_agg_kernel(ei_ref, rowid_ref, invdegT_ref,
                    w1_ref, b1_ref, w2_ref, b2_ref,
                    edge_out_ref, aggT_out_ref,
                    aggT_acc_ref):
    t = pl.program_id(0)
    tile_e = ei_ref.shape[0]
    n_pad = aggT_acc_ref.shape[1]

    @pl.when(t == 0)
    def _init():
        aggT_acc_ref[...] = jnp.zeros_like(aggT_acc_ref)

    # ---- edge block (this tile): Linear -> ReLU -> Linear ----------------
    ei = ei_ref[...]                                               # [tE, De]
    h1 = jnp.maximum(
        jnp.dot(ei, w1_ref[...], preferred_element_type=jnp.float32)
        + b1_ref[...], 0.0)                                        # [tE, H] f32
    e_emb = (jnp.dot(h1.astype(w2_ref.dtype), w2_ref[...],
                     preferred_element_type=jnp.float32)
             + b2_ref[...])                                        # [tE, Fe] f32
    edge_out_ref[...] = e_emb

    # ---- lane-dense scatter-add into the transposed accumulator ----------
    # mask[e, n] = (row[e] == n); lane-direction iota (cheap); one-hot is
    # exact even in bf16; padded edges carry sentinel row id == n_pad.
    node_ids = jax.lax.broadcasted_iota(jnp.int32, (tile_e, n_pad), 1)
    mask = (node_ids == rowid_ref[...]).astype(jnp.float32) \
        .astype(w2_ref.dtype)                                      # [tE, N_pad]
    # aggT[f, n] += sum_e e_emb[e, f] * mask[e, n]   (contract over edges)
    aggT_acc_ref[...] += jax.lax.dot_general(
        e_emb.astype(w2_ref.dtype), mask,
        dimension_numbers=(((0,), (0,)), ((), ())),
        preferred_element_type=jnp.float32)                        # [Fe, N_pad]

    @pl.when(t == pl.num_programs(0) - 1)
    def _finalize():
        # 1/deg applied in f32 on the lane-dense layout -> exact mean.
        aggT_out_ref[...] = aggT_acc_ref[...] * invdegT_ref[...]


# ---------------------------------------------------------------------------
# Phase 2: node MLP, tiled over node rows ("parallel" -> megacore-shardable).
# ---------------------------------------------------------------------------
def node_kernel(x_ref, agg_ref, w3x_ref, w3a_ref, b3_ref, w4_ref, b4_ref,
                out_ref):
    # concat([x, agg]) folded into split weights: x@W3x + agg@W3a
    h2 = jnp.maximum(
        jnp.dot(x_ref[...], w3x_ref[...], preferred_element_type=jnp.float32)
        + jnp.dot(agg_ref[...], w3a_ref[...], preferred_element_type=jnp.float32)
        + b3_ref[...], 0.0)
    out_ref[...] = (jnp.dot(h2, w4_ref[...], preferred_element_type=jnp.float32)
                    + b4_ref[...])


# ---------------------------------------------------------------------------
# Parameters (torch.nn.Linear default init), weights stored [in, out].
# ---------------------------------------------------------------------------
def init_linear(key, fan_in, fan_out):
    kw, kb = jax.random.split(key)
    bound = 1.0 / np.sqrt(fan_in)
    w = jax.random.uniform(kw, (fan_in, fan_out), jnp.float32, -bound, bound)
    b = jax.random.uniform(kb, (1, fan_out), jnp.float32, -bound, bound)
    return w, b


def init_graphnet_params(key, node_features, edge_features, global_features,
                         hidden_size, edge_features_out, skip_connection=False):
    edge_in = edge_features + (1 if skip_connection else 0) \
        + 2 * node_features + global_features
    node_in = node_features + edge_features_out + global_features
    k1, k2, k3, k4 = jax.random.split(key, 4)
    w1, b1 = init_linear(k1, edge_in, hidden_size)
    w2, b2 = init_linear(k2, hidden_size, edge_features_out)
    w3, b3 = init_linear(k3, node_in, hidden_size)
    w4, b4 = init_linear(k4, hidden_size, node_features)
    return dict(w1=w1, b1=b1, w2=w2, b2=b2, w3=w3, b3=b3, w4=w4, b4=b4)


# ---------------------------------------------------------------------------
# Forward wrapper (g=None, aggregate='mean', skip_connection=False).
# ---------------------------------------------------------------------------
def graphnet_forward(params, x, edge_index, edge_attr, *,
                     tile_e=512, tile_n=256, compute_dtype=jnp.float32):
    row, col = edge_index[0], edge_index[1]
    N, Fn = x.shape
    E = edge_attr.shape[0]
    H = params["w1"].shape[1]
    Fe_out = params["w2"].shape[1]

    # node tiling: single full tile for small N, else a multiple of 128
    if _round_up(N, 8) <= tile_n:
        tile_n = _round_up(N, 8)
    else:
        tile_n = _round_up(tile_n, 128)
    N_pad = _round_up(N, tile_n)
    n_node_tiles = N_pad // tile_n

    tile_e = max(128, _round_up(tile_e, 128))
    E_pad = _round_up(max(E, 1), tile_e)
    n_edge_tiles = E_pad // tile_e

    # --- JAX glue: data-dependent gather + concat, degree normalization ---
    edge_inputs = jnp.concatenate([x[row], x[col], edge_attr], axis=1)
    De = edge_inputs.shape[1]
    edge_inputs = jnp.pad(edge_inputs, ((0, E_pad - E), (0, 0)))
    edge_inputs = edge_inputs.astype(compute_dtype)

    # padded edges get sentinel row id N_pad -> never scatter anywhere
    rowid = jnp.full((E_pad, 1), N_pad, dtype=jnp.int32)
    rowid = rowid.at[:E, 0].set(row.astype(jnp.int32))

    cnt = jax.ops.segment_sum(jnp.ones((E,), jnp.float32), row, num_segments=N)
    invdegT = jnp.zeros((1, N_pad), jnp.float32).at[0, :N].set(
        1.0 / jnp.maximum(cnt, 1.0))

    x_p = jnp.pad(x.astype(jnp.float32), ((0, N_pad - N), (0, 0)))

    # weights [in, out]; edge-block weights optionally bf16 (f32 accumulate)
    w1 = params["w1"].astype(compute_dtype)
    b1 = params["b1"]
    w2 = params["w2"].astype(compute_dtype)
    b2 = params["b2"]
    w3 = params["w3"]
    w3x, w3a = w3[:Fn, :], w3[Fn:, :]       # concat([x, agg]) folded away
    b3, w4, b4 = params["b3"], params["w4"], params["b4"]

    def resident(arr):        # constant index_map -> DMA'd once, VMEM-resident
        return pl.BlockSpec(arr.shape, lambda i: (0, 0))

    itm = jnp.dtype(compute_dtype).itemsize

    # ---------------- Phase 1: edge MLP + aggregation ----------------------
    flops_a = (2 * E_pad * De * H + 2 * E_pad * H * Fe_out
               + 2 * E_pad * N_pad * Fe_out)
    bytes_a = int(edge_inputs.size * itm + rowid.size * 4 + N_pad * 4
                  + (w1.size + w2.size) * itm + (b1.size + b2.size) * 4
                  + E_pad * Fe_out * 4 + Fe_out * N_pad * 4)
    per_tile_a = tile_e * (De * itm + 4 + Fe_out * 4)          # streamed blocks
    resident_a = ((w1.size + w2.size) * itm + (b1.size + b2.size) * 4
                  + N_pad * 4 + Fe_out * N_pad * 4)
    temps_a = (tile_e * (H + Fe_out) * 4                        # h1, e_emb
               + tile_e * N_pad * (4 + itm))                    # iota + mask
    vmem_a = _clamp_vmem(2 * per_tile_a + 2 * resident_a
                         + max(Fe_out, 8) * N_pad * 4 + temps_a + (4 << 20))

    edge_out_p, aggT_mean = pl.pallas_call(
        edge_agg_kernel,
        out_shape=(jax.ShapeDtypeStruct((E_pad, Fe_out), jnp.float32),
                   jax.ShapeDtypeStruct((Fe_out, N_pad), jnp.float32)),
        grid_spec=pltpu.PrefetchScalarGridSpec(
            num_scalar_prefetch=0,
            grid=(n_edge_tiles,),
            in_specs=[
                pl.BlockSpec((tile_e, De), lambda t: (t, 0)),   # edge inputs
                pl.BlockSpec((tile_e, 1), lambda t: (t, 0)),    # row ids
                resident(invdegT),
                resident(w1), resident(b1), resident(w2), resident(b2),
            ],
            out_specs=(
                pl.BlockSpec((tile_e, Fe_out), lambda t: (t, 0)),   # edge emb
                pl.BlockSpec((Fe_out, N_pad), lambda t: (0, 0)),    # agg (T)
            ),
            scratch_shapes=[pltpu.VMEM((Fe_out, N_pad), jnp.float32)]),
        compiler_params=pltpu.CompilerParams(
            dimension_semantics=("arbitrary",),
            vmem_limit_bytes=vmem_a),
        cost_estimate=pl.CostEstimate(flops=int(flops_a), transcendentals=0,
                                      bytes_accessed=bytes_a),
    )(edge_inputs, rowid, invdegT, w1, b1, w2, b2)

    # layout plumbing only: row-major aggregation for the node block
    agg = aggT_mean.T                                            # [N_pad, Fe]

    # ---------------- Phase 2: node MLP over node-row tiles ---------------
    flops_b = 2 * N_pad * (Fn + Fe_out) * H + 2 * N_pad * H * Fn
    bytes_b = int((x_p.size + agg.size) * 4
                  + (w3x.size + w3a.size + b3.size + w4.size + b4.size) * 4
                  + N_pad * Fn * 4)
    per_tile_b = tile_n * (2 * Fn + Fe_out) * 4
    resident_b = (w3x.size + w3a.size + b3.size + w4.size + b4.size) * 4
    vmem_b = _clamp_vmem(2 * per_tile_b + 2 * resident_b
                         + 2 * tile_n * H * 4 + (4 << 20))

    node_out_p = pl.pallas_call(
        node_kernel,
        out_shape=jax.ShapeDtypeStruct((N_pad, Fn), jnp.float32),
        grid_spec=pltpu.PrefetchScalarGridSpec(
            num_scalar_prefetch=0,
            grid=(n_node_tiles,),
            in_specs=[
                pl.BlockSpec((tile_n, Fn), lambda i: (i, 0)),
                pl.BlockSpec((tile_n, Fe_out), lambda i: (i, 0)),
                resident(w3x), resident(w3a), resident(b3),
                resident(w4), resident(b4),
            ],
            out_specs=pl.BlockSpec((tile_n, Fn), lambda i: (i, 0))),
        compiler_params=pltpu.CompilerParams(
            dimension_semantics=("parallel",),
            vmem_limit_bytes=vmem_b),
        cost_estimate=pl.CostEstimate(flops=int(flops_b), transcendentals=0,
                                      bytes_accessed=bytes_b),
    )(x_p, agg, w3x, w3a, b3, w4, b4)

    return edge_out_p[:E, :], node_out_p[:N, :], None


# ---------------------------------------------------------------------------
# Pure-JAX reference (matches the PyTorch semantics; g=None, mean aggregation)
# ---------------------------------------------------------------------------
def graphnet_reference(params, x, edge_index, edge_attr):
    row, col = edge_index[0], edge_index[1]
    N = x.shape[0]
    with jax.default_matmul_precision("highest"):
        edge_inputs = jnp.concatenate([x[row], x[col], edge_attr], axis=1)
        h1 = jnp.maximum(edge_inputs @ params["w1"] + params["b1"], 0.0)
        e_emb = h1 @ params["w2"] + params["b2"]
        summed = jax.ops.segment_sum(e_emb, row, num_segments=N)
        cnt = jax.ops.segment_sum(jnp.ones((e_emb.shape[0],), jnp.float32),
                                  row, num_segments=N)
        agg = summed / jnp.maximum(cnt, 1.0)[:, None]
        node_inputs = jnp.concatenate([x, agg], axis=1)
        h2 = jnp.maximum(node_inputs @ params["w3"] + params["b3"], 0.0)
        n_emb = h2 @ params["w4"] + params["b4"]
    return e_emb, n_emb, None


def _make_graph(key, N, E, node_features, edge_features):
    k_x, k_e, k_row, k_col = jax.random.split(key, 4)
    x = jax.random.normal(k_x, (N, node_features), jnp.float32)
    edge_attr = jax.random.normal(k_e, (E, edge_features), jnp.float32)
    row = jax.random.randint(k_row, (E,), 0, N, jnp.int32)
    col = jax.random.randint(k_col, (E,), 0, N, jnp.int32)
    return x, jnp.stack([row, col], axis=0), edge_attr


def _run_case(key, N, E, node_features, edge_features, hidden, fe_out,
              tile_e, compute_dtype, rtol, atol):
    k_g, k_p = jax.random.split(key)
    x, edge_index, edge_attr = _make_graph(k_g, N, E, node_features,
                                           edge_features)
    params = init_graphnet_params(k_p, node_features, edge_features,
                                  global_features=0, hidden_size=hidden,
                                  edge_features_out=fe_out)
    e_emb, n_emb, _ = graphnet_forward(params, x, edge_index, edge_attr,
                                       tile_e=tile_e,
                                       compute_dtype=compute_dtype)
    jax.block_until_ready((e_emb, n_emb))
    e_ref, n_ref, _ = graphnet_reference(params, x, edge_index, edge_attr)
    np.testing.assert_allclose(np.asarray(e_emb), np.asarray(e_ref),
                               rtol=rtol, atol=atol)
    np.testing.assert_allclose(np.asarray(n_emb), np.asarray(n_ref),
                               rtol=rtol, atol=atol)


if __name__ == "__main__":
    key = jax.random.PRNGKey(0)
    k1, k2, k3, k4 = jax.random.split(key, 4)

    # 1) module-default sizes, f32, single edge tile / single node tile
    _run_case(k1, N=8, E=16, node_features=4, edge_features=4, hidden=32,
              fe_out=4, tile_e=512, compute_dtype=jnp.float32,
              rtol=1e-5, atol=1e-5)

    # 2) ragged graph, multiple edge tiles (tile_e=128 -> 3 tiles), f32
    _run_case(k2, N=37, E=300, node_features=5, edge_features=3, hidden=24,
              fe_out=6, tile_e=128, compute_dtype=jnp.float32,
              rtol=2e-5, atol=2e-5)

    # 3) larger graph: default 512-wide edge tiles, 2 node tiles, f32
    _run_case(k3, N=300, E=2000, node_features=4, edge_features=4, hidden=32,
              fe_out=4, tile_e=512, compute_dtype=jnp.float32,
              rtol=1e-4, atol=1e-4)

    # 4) bf16 MXU operands on the edge/aggregation path (f32 accumulation)
    _run_case(k4, N=8, E=16, node_features=4, edge_features=4, hidden=32,
              fe_out=4, tile_e=512, compute_dtype=jnp.bfloat16,
              rtol=5e-2, atol=5e-2)

    print("KERNEL_OK")
</pallas_src>

<mosaic_0001>
module attributes {stable_mosaic.version = 11 : i64} {
  func.func @edge_agg_kernel(%arg0: i32, %arg1: memref<512x12xf32, #tpu.memory_space<vmem>>, %arg2: memref<512x1xi32, #tpu.memory_space<vmem>>, %arg3: memref<1x8xf32, #tpu.memory_space<vmem>>, %arg4: memref<12x32xf32, #tpu.memory_space<vmem>>, %arg5: memref<1x32xf32, #tpu.memory_space<vmem>>, %arg6: memref<32x4xf32, #tpu.memory_space<vmem>>, %arg7: memref<1x4xf32, #tpu.memory_space<vmem>>, %arg8: memref<512x4xf32, #tpu.memory_space<vmem>>, %arg9: memref<4x8xf32, #tpu.memory_space<vmem>>, %arg10: memref<4x8xf32, #tpu.memory_space<vmem>>) attributes {dimension_semantics = [#tpu.dimension_semantics<arbitrary>], iteration_bounds = array<i64: 1>, scalar_prefetch = 0 : i64, scratch_operands = 1 : i64, tpu.core_type = #tpu.core_type<tc>, window_params = [{transform_indices = @transform_0, window_bounds = array<i64: 512, 12>}, {transform_indices = @transform_1, window_bounds = array<i64: 512, 1>}, {pipeline_mode = #tpu.pipeline_mode<synchronous>, transform_indices = @transform_2, window_bounds = array<i64: 1, 8>}, {pipeline_mode = #tpu.pipeline_mode<synchronous>, transform_indices = @transform_3, window_bounds = array<i64: 12, 32>}, {pipeline_mode = #tpu.pipeline_mode<synchronous>, transform_indices = @transform_4, window_bounds = array<i64: 1, 32>}, {pipeline_mode = #tpu.pipeline_mode<synchronous>, transform_indices = @transform_5, window_bounds = array<i64: 32, 4>}, {pipeline_mode = #tpu.pipeline_mode<synchronous>, transform_indices = @transform_6, window_bounds = array<i64: 1, 4>}, {transform_indices = @transform_7, window_bounds = array<i64: 512, 4>}, {pipeline_mode = #tpu.pipeline_mode<synchronous>, transform_indices = @transform_8, window_bounds = array<i64: 4, 8>}]} {
    %c0_i32 = arith.constant 0 : i32
    %0 = arith.cmpi eq, %arg0, %c0_i32 : i32
    %1 = arith.extui %0 : i1 to i32
    %c0_i32_0 = arith.constant 0 : i32
    %2 = arith.cmpi ne, %1, %c0_i32_0 : i32
    scf.if %2 {
      %cst_23 = arith.constant 0.000000e+00 : f32
      %30 = vector.broadcast %cst_23 : f32 to vector<4x8xf32>
      %c0_24 = arith.constant 0 : index
      %c0_25 = arith.constant 0 : index
      %31 = vector.load %arg10[%c0_24, %c0_25] : memref<4x8xf32, #tpu.memory_space<vmem>>, vector<4x8xf32>
      tpu.vector_store %arg10[%c0_24, %c0_25], %30 {strides = array<i32>} : memref<4x8xf32, #tpu.memory_space<vmem>>, vector<4x8xf32>,
    } else {
    }
    %c0 = arith.constant 0 : index
    %c0_1 = arith.constant 0 : index
    %3 = vector.load %arg1[%c0, %c0_1] : memref<512x12xf32, #tpu.memory_space<vmem>>, vector<512x12xf32>
    %c0_2 = arith.constant 0 : index
    %c0_3 = arith.constant 0 : index
    %4 = vector.load %arg4[%c0_2, %c0_3] : memref<12x32xf32, #tpu.memory_space<vmem>>, vector<12x32xf32>
    %cst = arith.constant dense<0.000000e+00> : vector<512x32xf32>
    %5 = tpu.matmul %3, %4, %cst {dimension_numbers = #tpu.dot_dimension_numbers<[1], [0], [0], [1], [0, 0, 1, 1], [], []>} : vector<512x12xf32>, vector<12x32xf32>, vector<512x32xf32> -> vector<512x32xf32>
    %c0_4 = arith.constant 0 : index
    %c0_5 = arith.constant 0 : index
    %6 = vector.load %arg5[%c0_4, %c0_5] : memref<1x32xf32, #tpu.memory_space<vmem>>, vector<1x32xf32>
    %7 = vector.broadcast %6 : vector<1x32xf32> to vector<512x32xf32>
    %8 = arith.addf %5, %7 : vector<512x32xf32>
    %cst_6 = arith.constant 0.000000e+00 : f32
    %9 = vector.broadcast %cst_6 : f32 to vector<512x32xf32>
    %10 = arith.maximumf %8, %9 : vector<512x32xf32>
    %c0_7 = arith.constant 0 : index
    %c0_8 = arith.constant 0 : index
    %11 = vector.load %arg6[%c0_7, %c0_8] : memref<32x4xf32, #tpu.memory_space<vmem>>, vector<32x4xf32>
    %cst_9 = arith.constant dense<0.000000e+00> : vector<512x4xf32>
    %12 = tpu.matmul %10, %11, %cst_9 {dimension_numbers = #tpu.dot_dimension_numbers<[1], [0], [0], [1], [0, 0, 1, 1], [], []>} : vector<512x32xf32>, vector<32x4xf32>, vector<512x4xf32> -> vector<512x4xf32>
    %c0_10 = arith.constant 0 : index
    %c0_11 = arith.constant 0 : index
    %13 = vector.load %arg7[%c0_10, %c0_11] : memref<1x4xf32, #tpu.memory_space<vmem>>, vector<1x4xf32>
    %14 = vector.broadcast %13 : vector<1x4xf32> to vector<512x4xf32>
    %15 = arith.addf %12, %14 : vector<512x4xf32>
    %c0_12 = arith.constant 0 : index
    %c0_13 = arith.constant 0 : index
    %16 = vector.load %arg8[%c0_12, %c0_13] : memref<512x4xf32, #tpu.memory_space<vmem>>, vector<512x4xf32>
    tpu.vector_store %arg8[%c0_12, %c0_13], %15 {strides = array<i32>} : memref<512x4xf32, #tpu.memory_space<vmem>>, vector<512x4xf32>,
    %17 = tpu.iota {dimensions = array<i32: 1>} : vector<512x8xi32>
    %c0_14 = arith.constant 0 : index
    %c0_15 = arith.constant 0 : index
    %18 = vector.load %arg2[%c0_14, %c0_15] : memref<512x1xi32, #tpu.memory_space<vmem>>, vector<512x1xi32>
    %19 = vector.broadcast %18 : vector<512x1xi32> to vector<512x8xi32>
    %20 = arith.cmpi eq, %17, %19 : vector<512x8xi32>
    %21 = arith.extui %20 : vector<512x8xi1> to vector<512x8xi32>
    %22 = arith.sitofp %21 : vector<512x8xi32> to vector<512x8xf32>
    %c0_16 = arith.constant 0 : index
    %c0_17 = arith.constant 0 : index
    %23 = vector.load %arg10[%c0_16, %c0_17] : memref<4x8xf32, #tpu.memory_space<vmem>>, vector<4x8xf32>
    %cst_18 = arith.constant dense<0.000000e+00> : vector<4x8xf32>
    %24 = tpu.matmul %15, %22, %cst_18 {dimension_numbers = #tpu.dot_dimension_numbers<[0], [0], [1], [1], [0, 1, 1, 1], [], []>} : vector<512x4xf32>, vector<512x8xf32>, vector<4x8xf32> -> vector<4x8xf32>
    %25 = arith.addf %23, %24 : vector<4x8xf32>
    %c0_19 = arith.constant 0 : index
    %c0_20 = arith.constant 0 : index
    %26 = vector.load %arg10[%c0_19, %c0_20] : memref<4x8xf32, #tpu.memory_space<vmem>>, vector<4x8xf32>
    tpu.vector_store %arg10[%c0_19, %c0_20], %25 {strides = array<i32>} : memref<4x8xf32, #tpu.memory_space<vmem>>, vector<4x8xf32>,
    %c0_i32_21 = arith.constant 0 : i32
    %27 = arith.cmpi eq, %arg0, %c0_i32_21 : i32
    %28 = arith.extui %27 : i1 to i32
    %c0_i32_22 = arith.constant 0 : i32
    %29 = arith.cmpi ne, %28, %c0_i32_22 : i32
    scf.if %29 {
      %c0_23 = arith.constant 0 : index
      %c0_24 = arith.constant 0 : index
      %30 = vector.load %arg10[%c0_23, %c0_24] : memref<4x8xf32, #tpu.memory_space<vmem>>, vector<4x8xf32>
      %c0_25 = arith.constant 0 : index
      %c0_26 = arith.constant 0 : index
      %31 = vector.load %arg3[%c0_25, %c0_26] : memref<1x8xf32, #tpu.memory_space<vmem>>, vector<1x8xf32>
      %32 = vector.broadcast %31 : vector<1x8xf32> to vector<4x8xf32>
      %33 = arith.mulf %30, %32 : vector<4x8xf32>
      %c0_27 = arith.constant 0 : index
      %c0_28 = arith.constant 0 : index
      %34 = vector.load %arg9[%c0_27, %c0_28] : memref<4x8xf32, #tpu.memory_space<vmem>>, vector<4x8xf32>
      tpu.vector_store %arg9[%c0_27, %c0_28], %33 {strides = array<i32>} : memref<4x8xf32, #tpu.memory_space<vmem>>, vector<4x8xf32>,
    } else {
    }
    return
  }
  func.func @transform_0(%arg0: i32) -> (i32, i32) {
    %c0_i32 = arith.constant 0 : i32
    %c0_i32_0 = arith.constant 0 : i32
    return %arg0, %c0_i32 : i32, i32
  }
  func.func @transform_1(%arg0: i32) -> (i32, i32) {
    %c0_i32 = arith.constant 0 : i32
    %c0_i32_0 = arith.constant 0 : i32
    return %arg0, %c0_i32 : i32, i32
  }
  func.func @transform_2(%arg0: i32) -> (i32, i32) {
    %c0_i32 = arith.constant 0 : i32
    %c0_i32_0 = arith.constant 0 : i32
    %c0_i32_1 = arith.constant 0 : i32
    return %c0_i32, %c0_i32_0 : i32, i32
  }
  func.func @transform_3(%arg0: i32) -> (i32, i32) {
    %c0_i32 = arith.constant 0 : i32
    %c0_i32_0 = arith.constant 0 : i32
    %c0_i32_1 = arith.constant 0 : i32
    return %c0_i32, %c0_i32_0 : i32, i32
  }
  func.func @transform_4(%arg0: i32) -> (i32, i32) {
    %c0_i32 = arith.constant 0 : i32
    %c0_i32_0 = arith.constant 0 : i32
    %c0_i32_1 = arith.constant 0 : i32
    return %c0_i32, %c0_i32_0 : i32, i32
  }
  func.func @transform_5(%arg0: i32) -> (i32, i32) {
    %c0_i32 = arith.constant 0 : i32
    %c0_i32_0 = arith.constant 0 : i32
    %c0_i32_1 = arith.constant 0 : i32
    return %c0_i32, %c0_i32_0 : i32, i32
  }
  func.func @transform_6(%arg0: i32) -> (i32, i32) {
    %c0_i32 = arith.constant 0 : i32
    %c0_i32_0 = arith.constant 0 : i32
    %c0_i32_1 = arith.constant 0 : i32
    return %c0_i32, %c0_i32_0 : i32, i32
  }
  func.func @transform_7(%arg0: i32) -> (i32, i32) {
    %c0_i32 = arith.constant 0 : i32
    %c0_i32_0 = arith.constant 0 : i32
    return %arg0, %c0_i32 : i32, i32
  }
  func.func @transform_8(%arg0: i32) -> (i32, i32) {
    %c0_i32 = arith.constant 0 : i32
    %c0_i32_0 = arith.constant 0 : i32
    %c0_i32_1 = arith.constant 0 : i32
    return %c0_i32, %c0_i32_0 : i32, i32
  }
}

</mosaic_0001>

<llo_original>
// kernel: tpu_custom_call.1
$region0: #{tpu_custom_call.1}
  #allocation0 [shape = 'u32[]', space=smem, size = 0x4, offset = 0x4, fixed_abs, tag = 'smem constant byte address 0x4 - core index']
  #allocation1 [shape = 'u32[144,128]{1,0:T(1,128)}', space=vmem, size = 0x12000, scoped, tag = 'internal scratch']
  #allocation2 [shape = 'f32[4,8]{1,0:T(4,128)}', space=vmem, size = 0x800, scoped, tag = 'scratch operand']
  %s0 = inlined_call_operand.vmem [shape: f32[512,12], index: 0, kind: input, shape index: {}]
  %s1 = inlined_call_operand.vmem [shape: s32[512,1], index: 1, kind: input, shape index: {}]
  %s2 = inlined_call_operand.vmem [shape: f32[1,8], index: 2, kind: input, shape index: {}]
  %s3 = inlined_call_operand.vmem [shape: f32[12,32], index: 3, kind: input, shape index: {}]
  %s4 = inlined_call_operand.vmem [shape: f32[1,32], index: 4, kind: input, shape index: {}]
  %s5 = inlined_call_operand.vmem [shape: f32[32,4], index: 5, kind: input, shape index: {}]
  %s6 = inlined_call_operand.vmem [shape: f32[1,4], index: 6, kind: input, shape index: {}]
  %s7 = inlined_call_operand.vmem [shape: f32[512,4], index: 7, kind: output, shape index: {0}]
  %s8 = inlined_call_operand.hbm [shape: f32[4,8], index: 8, kind: output, shape index: {1}]
  %9 = xla_tuple %s7, %s8
  %s10 = sld [smem:[#allocation0]]
  $region54: #{tpu_custom_call.1} parent=0
    _
  %s12 = ssub.s32 1, %s10
  %s13 = scalar_select 0, %s12, %s10
  $region1: #{tpu_custom_call.1} parent=0
    #allocation3 [shape = 'u8[2048]{0}', space=vmem, size = 0x800, scoped, tag = 'output window, operand 1, single buffered']
    #allocation4 [shape = 's32[1]{0}', space=sflag, size = 0x4, scoped, tag = 'scoped memory for tpu_custom_call.1']
    %14 = vsyncpa [#allocation4], 0
    // Predicated region
    $region2: #{tpu_custom_call.1} parent=1 // pred_check
      _
    $region3: #{tpu_custom_call.1} parent=1 // pred_check_branch
      %16 = sbr.rel (0) target = $region5
    $region4: #{tpu_custom_call.1} parent=1 // pred_region
      _
    $region5: #{tpu_custom_call.1} parent=1 // pred_fallthru
      _
    // Predicated region
    $region6: #{tpu_custom_call.1} parent=1 // pred_check
      _
    $region7: #{tpu_custom_call.1} parent=1 // pred_check_branch
      %18 = sbr.rel (0) target = $region9
    $region8: #{tpu_custom_call.1} parent=1 // pred_region
      _
    $region9: #{tpu_custom_call.1} parent=1 // pred_fallthru
      _
    // Predicated region
    $region10: #{tpu_custom_call.1} parent=1 // pred_check
      _
    $region11: #{tpu_custom_call.1} parent=1 // pred_check_branch
      %20 = sbr.rel (0) target = $region13
    $region12: #{tpu_custom_call.1} parent=1 // pred_region
      _
    $region13: #{tpu_custom_call.1} parent=1 // pred_fallthru
      _
    // Predicated region
    $region14: #{tpu_custom_call.1} parent=1 // pred_check
      _
    $region15: #{tpu_custom_call.1} parent=1 // pred_check_branch
      %22 = sbr.rel (0) target = $region17
    $region16: #{tpu_custom_call.1} parent=1 // pred_region
      _
    $region17: #{tpu_custom_call.1} parent=1 // pred_fallthru
      _
    // Predicated region
    $region18: #{tpu_custom_call.1} parent=1 // pred_check
      _
    $region19: #{tpu_custom_call.1} parent=1 // pred_check_branch
      %24 = sbr.rel (0) target = $region21
    $region20: #{tpu_custom_call.1} parent=1 // pred_region
      _
    $region21: #{tpu_custom_call.1} parent=1 // pred_fallthru
      _
    // Predicated region
    $region22: #{tpu_custom_call.1} parent=1 // pred_check
      _
    $region23: #{tpu_custom_call.1} parent=1 // pred_check_branch
      %26 = sbr.rel (0) target = $region25
    $region24: #{tpu_custom_call.1} parent=1 // pred_region
      _
    $region25: #{tpu_custom_call.1} parent=1 // pred_fallthru
      _
    // Predicated region
    $region26: #{tpu_custom_call.1} parent=1 // pred_check
      _
    $region27: #{tpu_custom_call.1} parent=1 // pred_check_branch
      %28 = sbr.rel (0) target = $region29
    $region28: #{tpu_custom_call.1} parent=1 // pred_region
      _
    $region29: #{tpu_custom_call.1} parent=1 // pred_fallthru
      _
    %p29 = scmp.eq.s32.totalorder 0, 0
    // Predicated region
    $region30: #{tpu_custom_call.1} parent=1 // pred_check
      %p30 = pneg %p29
    $region31: #{tpu_custom_call.1} parent=1 // pred_check_branch
      %32 = sbr.rel (%p30) target = $region33
    $region32: #{tpu_custom_call.1} parent=1 // pred_region
      %vm33 = vcmask 60416
      %34 = vst.msk [vmem:[#allocation2] sm:$0xf] %vm33, 0.0
    $region33: #{tpu_custom_call.1} parent=1 // pred_fallthru
      _
    %v35 = vld [vmem:[%s0] sm:$0xff]
    %v36 = vld [vmem:[%s0 + $0x8] sm:$0xff]
    %v37 = vld [vmem:[%s0 + $0x10] sm:$0xff]
    %v38 = vld [vmem:[%s0 + $0x18] sm:$0xff]
    %v39 = vld [vmem:[%s0 + $0x20] sm:$0xff]
    %v40 = vld [vmem:[%s0 + $0x28] sm:$0xff]
    %v41 = vld [vmem:[%s0 + $0x30] sm:$0xff]
    %v42 = vld [vmem:[%s0 + $0x38] sm:$0xff]
    %v43 = vld [vmem:[%s0 + $0x40] sm:$0xff]
    %v44 = vld [vmem:[%s0 + $0x48] sm:$0xff]
    %v45 = vld [vmem:[%s0 + $0x50] sm:$0xff]
    %v46 = vld [vmem:[%s0 + $0x58] sm:$0xff]
    %v47 = vld [vmem:[%s0 + $0x60] sm:$0xff]
    %v48 = vld [vmem:[%s0 + $0x68] sm:$0xff]
    %v49 = vld [vmem:[%s0 + $0x70] sm:$0xff]
    %v50 = vld [vmem:[%s0 + $0x78] sm:$0xff]
    %v51 = vld [vmem:[%s0 + $0x80] sm:$0xff]
    %v52 = vld [vmem:[%s0 + $0x88] sm:$0xff]
    %v53 = vld [vmem:[%s0 + $0x90] sm:$0xff]
    %v54 = vld [vmem:[%s0 + $0x98] sm:$0xff]
    %v55 = vld [vmem:[%s0 + $0xa0] sm:$0xff]
    %v56 = vld [vmem:[%s0 + $0xa8] sm:$0xff]
    %v57 = vld [vmem:[%s0 + $0xb0] sm:$0xff]
    %v58 = vld [vmem:[%s0 + $0xb8] sm:$0xff]
    %v59 = vld [vmem:[%s0 + $0xc0] sm:$0xff]
    %v60 = vld [vmem:[%s0 + $0xc8] sm:$0xff]
    %v61 = vld [vmem:[%s0 + $0xd0] sm:$0xff]
    %v62 = vld [vmem:[%s0 + $0xd8] sm:$0xff]
    %v63 = vld [vmem:[%s0 + $0xe0] sm:$0xff]
    %v64 = vld [vmem:[%s0 + $0xe8] sm:$0xff]
    %v65 = vld [vmem:[%s0 + $0xf0] sm:$0xff]
    %v66 = vld [vmem:[%s0 + $0xf8] sm:$0xff]
    %v67 = vld [vmem:[%s0 + $0x100] sm:$0xff]
    %v68 = vld [vmem:[%s0 + $0x108] sm:$0xff]
    %v69 = vld [vmem:[%s0 + $0x110] sm:$0xff]
    %v70 = vld [vmem:[%s0 + $0x118] sm:$0xff]
    %v71 = vld [vmem:[%s0 + $0x120] sm:$0xff]
    %v72 = vld [vmem:[%s0 + $0x128] sm:$0xff]
    %v73 = vld [vmem:[%s0 + $0x130] sm:$0xff]
    %v74 = vld [vmem:[%s0 + $0x138] sm:$0xff]
    %v75 = vld [vmem:[%s0 + $0x140] sm:$0xff]
    %v76 = vld [vmem:[%s0 + $0x148] sm:$0xff]
    %v77 = vld [vmem:[%s0 + $0x150] sm:$0xff]
    %v78 = vld [vmem:[%s0 + $0x158] sm:$0xff]
    %v79 = vld [vmem:[%s0 + $0x160] sm:$0xff]
    %v80 = vld [vmem:[%s0 + $0x168] sm:$0xff]
    %v81 = vld [vmem:[%s0 + $0x170] sm:$0xff]
    %v82 = vld [vmem:[%s0 + $0x178] sm:$0xff]
    %v83 = vld [vmem:[%s0 + $0x180] sm:$0xff]
    %v84 = vld [vmem:[%s0 + $0x188] sm:$0xff]
    %v85 = vld [vmem:[%s0 + $0x190] sm:$0xff]
    %v86 = vld [vmem:[%s0 + $0x198] sm:$0xff]
    %v87 = vld [vmem:[%s0 + $0x1a0] sm:$0xff]
    %v88 = vld [vmem:[%s0 + $0x1a8] sm:$0xff]
    %v89 = vld [vmem:[%s0 + $0x1b0] sm:$0xff]
    %v90 = vld [vmem:[%s0 + $0x1b8] sm:$0xff]
    %v91 = vld [vmem:[%s0 + $0x1c0] sm:$0xff]
    %v92 = vld [vmem:[%s0 + $0x1c8] sm:$0xff]
    %v93 = vld [vmem:[%s0 + $0x1d0] sm:$0xff]
    %v94 = vld [vmem:[%s0 + $0x1d8] sm:$0xff]
    %v95 = vld [vmem:[%s0 + $0x1e0] sm:$0xff]
    %v96 = vld [vmem:[%s0 + $0x1e8] sm:$0xff]
    %v97 = vld [vmem:[%s0 + $0x1f0] sm:$0xff]
    %v98 = vld [vmem:[%s0 + $0x1f8] sm:$0xff]
    %v99 = vld [vmem:[%s3] sm:$0xff]
    %v100 = vld [vmem:[%s3 + $0x8] sm:$0xf]
    %v101 = vld [vmem:[%s4] sm:$0x1]
    %v103 = vlaneseq
    %v104 = vshrl.u32 %v103, 7
    %v105 = vsub.s32 0, %v104
    %v106 = vrot.slane %v101, %v105
    %vm108 = vcmask 97280
    %v110 = vsel %vm108, %v35, 0
    %v113 = vsel %vm108, %v36, 0
    %v116 = vsel %vm108, %v37, 0
    %v119 = vsel %vm108, %v38, 0
    %v122 = vsel %vm108, %v39, 0
    %v125 = vsel %vm108, %v40, 0
    %v128 = vsel %vm108, %v41, 0
    %v131 = vsel %vm108, %v42, 0
    %v134 = vsel %vm108, %v43, 0
    %v137 = vsel %vm108, %v44, 0
    %v140 = vsel %vm108, %v45, 0
    %v143 = vsel %vm108, %v46, 0
    %v146 = vsel %vm108, %v47, 0
    %v149 = vsel %vm108, %v48, 0
    %v152 = vsel %vm108, %v49, 0
    %v155 = vsel %vm108, %v50, 0
    %v158 = vsel %vm108, %v51, 0
    %v161 = vsel %vm108, %v52, 0
    %v164 = vsel %vm108, %v53, 0
    %v167 = vsel %vm108, %v54, 0
    %v170 = vsel %vm108, %v55, 0
    %v173 = vsel %vm108, %v56, 0
    %v176 = vsel %vm108, %v57, 0
    %v179 = vsel %vm108, %v58, 0
    %v182 = vsel %vm108, %v59, 0
    %v185 = vsel %vm108, %v60, 0
    %v188 = vsel %vm108, %v61, 0
    %v191 = vsel %vm108, %v62, 0
    %v194 = vsel %vm108, %v63, 0
    %v197 = vsel %vm108, %v64, 0
    %v200 = vsel %vm108, %v65, 0
    %v203 = vsel %vm108, %v66, 0
    %v206 = vsel %vm108, %v67, 0
    %v209 = vsel %vm108, %v68, 0
    %v212 = vsel %vm108, %v69, 0
    %v215 = vsel %vm108, %v70, 0
    %v218 = vsel %vm108, %v71, 0
    %v221 = vsel %vm108, %v72, 0
    %v224 = vsel %vm108, %v73, 0
    %v227 = vsel %vm108, %v74, 0
    %v230 = vsel %vm108, %v75, 0
    %v233 = vsel %vm108, %v76, 0
    %v236 = vsel %vm108, %v77, 0
    %v239 = vsel %vm108, %v78, 0
    %v242 = vsel %vm108, %v79, 0
    %v245 = vsel %vm108, %v80, 0
    %v248 = vsel %vm108, %v81, 0
    %v251 = vsel %vm108, %v82, 0
    %v254 = vsel %vm108, %v83, 0
    %v257 = vsel %vm108, %v84, 0
    %v260 = vsel %vm108, %v85, 0
    %v263 = vsel %vm108, %v86, 0
    %v266 = vsel %vm108, %v87, 0
    %v269 = vsel %vm108, %v88, 0
    %v272 = vsel %vm108, %v89, 0
    %v275 = vsel %vm108, %v90, 0
    %v278 = vsel %vm108, %v91, 0
    %v281 = vsel %vm108, %v92, 0
    %v284 = vsel %vm108, %v93, 0
    %v287 = vsel %vm108, %v94, 0
    %v290 = vsel %vm108, %v95, 0
    %v293 = vsel %vm108, %v96, 0
    %v296 = vsel %vm108, %v97, 0
    %v299 = vsel %vm108, %v98, 0
    %vm301 = vcmask 1043456
    %v303 = vsel %vm301, %v100, 0
    %305 = vmatprep.subr.mxu0 0.0
    %306 = vmatpush1.msra.mxu0 0.0
    %307 = vmatprep.subr.mxu0 0.0
    %308 = vmatpush1.msra.mxu0 0.0
    %309 = vmatprep.subr.mxu0 0.0
    %310 = vmatpush1.msra.mxu0 0.0
    %311 = vmatprep.subr.mxu0 0.0
    %312 = vmatpush1.msra.mxu0 0.0
    %313 = vmatprep.subr.mxu0 0.0
    %314 = vmatpush1.msra.mxu0 0.0
    %315 = vmatprep.subr.mxu0 0.0
    %316 = vmatpush1.msra.mxu0 0.0
    %317 = vmatprep.subr.mxu0 0.0
    %318 = vmatpush1.msra.mxu0 0.0
    %319 = vmatprep.subr.mxu0 0.0
    %320 = vmatpush1.msra.mxu0 0.0
    %321 = vmatprep.subr.mxu0 0.0
    %322 = vmatpush1.msra.mxu0 0.0
    %323 = vmatprep.subr.mxu0 0.0
    %324 = vmatpush1.msra.mxu0 0.0
    %325 = vmatprep.subr.mxu0 0.0
    %326 = vmatpush1.msra.mxu0 0.0
    %327 = vmatprep.subr.mxu0 0.0
    %328 = vmatpush1.msra.mxu0 0.0
    %329 = vmatprep.subr.mxu0 0.0
    %330 = vmatpush1.msra.mxu0 0.0
    %331 = vmatprep.subr.mxu0 0.0
    %332 = vmatpush1.msra.mxu0 0.0
    %333 = vmatprep.subr.mxu0 0.0
    %334 = vmatpush1.msra.mxu0 %v303
    %335 = vmatprep.subr.mxu0 0.0
    %336 = vmatpush1.msra.mxu0 %v99
    %337 = vmatprep.subr.mxu0 0.0
    %338 = vmatpush2.msra.mxu0 0.0
    %339 = vmatprep.subr.mxu0 0.0
    %340 = vmatpush2.msra.mxu0 0.0
    %341 = vmatprep.subr.mxu0 0.0
    %342 = vmatpush2.msra.mxu0 0.0
    %343 = vmatprep.subr.mxu0 0.0
    %344 = vmatpush2.msra.mxu0 0.0
    %345 = vmatprep.subr.mxu0 0.0
    %346 = vmatpush2.msra.mxu0 0.0
    %347 = vmatprep.subr.mxu0 0.0
    %348 = vmatpush2.msra.mxu0 0.0
    %349 = vmatprep.subr.mxu0 0.0
    %350 = vmatpush2.msra.mxu0 0.0
    %351 = vmatprep.subr.mxu0 0.0
    %352 = vmatpush2.msra.mxu0 0.0
    %353 = vmatprep.subr.mxu0 0.0
    %354 = vmatpush2.msra.mxu0 0.0
    %355 = vmatprep.subr.mxu0 0.0
    %356 = vmatpush2.msra.mxu0 0.0
    %357 = vmatprep.subr.mxu0 0.0
    %358 = vmatpush2.msra.mxu0 0.0
    %359 = vmatprep.subr.mxu0 0.0
    %360 = vmatpush2.msra.mxu0 0.0
    %361 = vmatprep.subr.mxu0 0.0
    %362 = vmatpush2.msra.mxu0 0.0
    %363 = vmatprep.subr.mxu0 0.0
    %364 = vmatpush2.msra.mxu0 0.0
    %365 = vmatprep.subr.mxu0 0.0
    %366 = vmatpush2.msra.mxu0 0.0
    %367 = vmatprep.subr.mxu0 0.0
    %368 = vmatpush2.msra.mxu0 0.0
    %369 = vmatprep.mubr.f32.mxu0 0.0
    %370 = vmatmul.mubr.f32.gmra.mxu0 %v110
    %v371 = vpop.f32.mrf.mxu0
    %v372 = vadd.f32 %v106, %v371
    %v373 = vpop.f32.mrf.mxu0
    %374 = vmatprep.mubr.f32.mxu0 0.0
    %375 = vmatmul.mubr.f32.gmra.mxu0 %v113
    %v376 = vpop.f32.mrf.mxu0
    %v377 = vadd.f32 %v106, %v376
    %v378 = vpop.f32.mrf.mxu0
    %379 = vmatprep.mubr.f32.mxu0 0.0
    %380 = vmatmul.mubr.f32.gmra.mxu0 %v116
    %v381 = vpop.f32.mrf.mxu0
    %v382 = vadd.f32 %v106, %v381
    %v383 = vpop.f32.mrf.mxu0
    %384 = vmatprep.mubr.f32.mxu0 0.0
    %385 = vmatmul.mubr.f32.gmra.mxu0 %v119
    %v386 = vpop.f32.mrf.mxu0
    %v387 = vadd.f32 %v106, %v386
    %v388 = vpop.f32.mrf.mxu0
    %389 = vmatprep.mubr.f32.mxu0 0.0
    %390 = vmatmul.mubr.f32.gmra.mxu0 %v122
    %v391 = vpop.f32.mrf.mxu0
    %v392 = vadd.f32 %v106, %v391
    %v393 = vpop.f32.mrf.mxu0
    %394 = vmatprep.mubr.f32.mxu0 0.0
    %395 = vmatmul.mubr.f32.gmra.mxu0 %v125
    %v396 = vpop.f32.mrf.mxu0
    %v397 = vadd.f32 %v106, %v396
    %v398 = vpop.f32.mrf.mxu0
    %399 = vmatprep.mubr.f32.mxu0 0.0
    %400 = vmatmul.mubr.f32.gmra.mxu0 %v128
    %v401 = vpop.f32.mrf.mxu0
    %v402 = vadd.f32 %v106, %v401
    %v403 = vpop.f32.mrf.mxu0
    %404 = vmatprep.mubr.f32.mxu0 0.0
    %405 = vmatmul.mubr.f32.gmra.mxu0 %v131
    %v406 = vpop.f32.mrf.mxu0
    %v407 = vadd.f32 %v106, %v406
    %v408 = vpop.f32.mrf.mxu0
    %409 = vmatprep.mubr.f32.mxu0 0.0
    %410 = vmatmul.mubr.f32.gmra.mxu0 %v134
    %v411 = vpop.f32.mrf.mxu0
    %v412 = vadd.f32 %v106, %v411
    %v413 = vpop.f32.mrf.mxu0
    %414 = vmatprep.mubr.f32.mxu0 0.0
    %415 = vmatmul.mubr.f32.gmra.mxu0 %v137
    %v416 = vpop.f32.mrf.mxu0
    %v417 = vadd.f32 %v106, %v416
    %v418 = vpop.f32.mrf.mxu0
    %419 = vmatprep.mubr.f32.mxu0 0.0
    %420 = vmatmul.mubr.f32.gmra.mxu0 %v140
    %v421 = vpop.f32.mrf.mxu0
    %v422 = vadd.f32 %v106, %v421
    %v423 = vpop.f32.mrf.mxu0
    %424 = vmatprep.mubr.f32.mxu0 0.0
    %425 = vmatmul.mubr.f32.gmra.mxu0 %v143
    %v426 = vpop.f32.mrf.mxu0
    %v427 = vadd.f32 %v106, %v426
    %v428 = vpop.f32.mrf.mxu0
    %429 = vmatprep.mubr.f32.mxu0 0.0
    %430 = vmatmul.mubr.f32.gmra.mxu0 %v146
    %v431 = vpop.f32.mrf.mxu0
    %v432 = vadd.f32 %v106, %v431
    %v433 = vpop.f32.mrf.mxu0
    %434 = vmatprep.mubr.f32.mxu0 0.0
    %435 = vmatmul.mubr.f32.gmra.mxu0 %v149
    %v436 = vpop.f32.mrf.mxu0
    %v437 = vadd.f32 %v106, %v436
    %v438 = vpop.f32.mrf.mxu0
    %439 = vmatprep.mubr.f32.mxu0 0.0
    %440 = vmatmul.mubr.f32.gmra.mxu0 %v152
    %v441 = vpop.f32.mrf.mxu0
    %v442 = vadd.f32 %v106, %v441
    %v443 = vpop.f32.mrf.mxu0
    %444 = vmatprep.mubr.f32.mxu0 0.0
    %445 = vmatmul.mubr.f32.gmra.mxu0 %v155
    %v446 = vpop.f32.mrf.mxu0
    %v447 = vadd.f32 %v106, %v446
    %v448 = vpop.f32.mrf.mxu0
    %449 = vmatprep.mubr.f32.mxu0 0.0
    %450 = vmatmul.mubr.f32.gmra.mxu0 %v158
    %v451 = vpop.f32.mrf.mxu0
    %v452 = vadd.f32 %v106, %v451
    %v453 = vpop.f32.mrf.mxu0
    %454 = vmatprep.mubr.f32.mxu0 0.0
    %455 = vmatmul.mubr.f32.gmra.mxu0 %v161
    %v456 = vpop.f32.mrf.mxu0
    %v457 = vadd.f32 %v106, %v456
    %v458 = vpop.f32.mrf.mxu0
    %459 = vmatprep.mubr.f32.mxu0 0.0
    %460 = vmatmul.mubr.f32.gmra.mxu0 %v164
    %v461 = vpop.f32.mrf.mxu0
    %v462 = vadd.f32 %v106, %v461
    %v463 = vpop.f32.mrf.mxu0
    %464 = vmatprep.mubr.f32.mxu0 0.0
    %465 = vmatmul.mubr.f32.gmra.mxu0 %v167
    %v466 = vpop.f32.mrf.mxu0
    %v467 = vadd.f32 %v106, %v466
    %v468 = vpop.f32.mrf.mxu0
    %469 = vmatprep.mubr.f32.mxu0 0.0
    %470 = vmatmul.mubr.f32.gmra.mxu0 %v170
    %v471 = vpop.f32.mrf.mxu0
    %v472 = vadd.f32 %v106, %v471
    %v473 = vpop.f32.mrf.mxu0
    %474 = vmatprep.mubr.f32.mxu0 0.0
    %475 = vmatmul.mubr.f32.gmra.mxu0 %v173
    %v476 = vpop.f32.mrf.mxu0
    %v477 = vadd.f32 %v106, %v476
    %v478 = vpop.f32.mrf.mxu0
    %479 = vmatprep.mubr.f32.mxu0 0.0
    %480 = vmatmul.mubr.f32.gmra.mxu0 %v176
    %v481 = vpop.f32.mrf.mxu0
    %v482 = vadd.f32 %v106, %v481
    %v483 = vpop.f32.mrf.mxu0
    %484 = vmatprep.mubr.f32.mxu0 0.0
    %485 = vmatmul.mubr.f32.gmra.mxu0 %v179
    %v486 = vpop.f32.mrf.mxu0
    %v487 = vadd.f32 %v106, %v486
    %v488 = vpop.f32.mrf.mxu0
    %489 = vmatprep.mubr.f32.mxu0 0.0
    %490 = vmatmul.mubr.f32.gmra.mxu0 %v182
    %v491 = vpop.f32.mrf.mxu0
    %v492 = vadd.f32 %v106, %v491
    %v493 = vpop.f32.mrf.mxu0
    %494 = vmatprep.mubr.f32.mxu0 0.0
    %495 = vmatmul.mubr.f32.gmra.mxu0 %v185
    %v496 = vpop.f32.mrf.mxu0
    %v497 = vadd.f32 %v106, %v496
    %v498 = vpop.f32.mrf.mxu0
    %499 = vmatprep.mubr.f32.mxu0 0.0
    %500 = vmatmul.mubr.f32.gmra.mxu0 %v188
    %v501 = vpop.f32.mrf.mxu0
    %v502 = vadd.f32 %v106, %v501
    %v503 = vpop.f32.mrf.mxu0
    %504 = vmatprep.mubr.f32.mxu0 0.0
    %505 = vmatmul.mubr.f32.gmra.mxu0 %v191
    %v506 = vpop.f32.mrf.mxu0
    %v507 = vadd.f32 %v106, %v506
    %v508 = vpop.f32.mrf.mxu0
    %509 = vmatprep.mubr.f32.mxu0 0.0
    %510 = vmatmul.mubr.f32.gmra.mxu0 %v194
    %v511 = vpop.f32.mrf.mxu0
    %v512 = vadd.f32 %v106, %v511
    %v513 = vpop.f32.mrf.mxu0
    %514 = vmatprep.mubr.f32.mxu0 0.0
    %515 = vmatmul.mubr.f32.gmra.mxu0 %v197
    %v516 = vpop.f32.mrf.mxu0
    %v517 = vadd.f32 %v106, %v516
    %v518 = vpop.f32.mrf.mxu0
    %519 = vmatprep.mubr.f32.mxu0 0.0
    %520 = vmatmul.mubr.f32.gmra.mxu0 %v200
    %v521 = vpop.f32.mrf.mxu0
    %v522 = vadd.f32 %v106, %v521
    %v523 = vpop.f32.mrf.mxu0
    %524 = vmatprep.mubr.f32.mxu0 0.0
    %525 = vmatmul.mubr.f32.gmra.mxu0 %v203
    %v526 = vpop.f32.mrf.mxu0
    %v527 = vadd.f32 %v106, %v526
    %v528 = vpop.f32.mrf.mxu0
    %529 = vmatprep.mubr.f32.mxu0 0.0
    %530 = vmatmul.mubr.f32.gmra.mxu0 %v206
    %v531 = vpop.f32.mrf.mxu0
    %v532 = vadd.f32 %v106, %v531
    %v533 = vpop.f32.mrf.mxu0
    %534 = vmatprep.mubr.f32.mxu0 0.0
    %535 = vmatmul.mubr.f32.gmra.mxu0 %v209
    %v536 = vpop.f32.mrf.mxu0
    %v537 = vadd.f32 %v106, %v536
    %v538 = vpop.f32.mrf.mxu0
    %539 = vmatprep.mubr.f32.mxu0 0.0
    %540 = vmatmul.mubr.f32.gmra.mxu0 %v212
    %v541 = vpop.f32.mrf.mxu0
    %v542 = vadd.f32 %v106, %v541
    %v543 = vpop.f32.mrf.mxu0
    %544 = vmatprep.mubr.f32.mxu0 0.0
    %545 = vmatmul.mubr.f32.gmra.mxu0 %v215
    %v546 = vpop.f32.mrf.mxu0
    %v547 = vadd.f32 %v106, %v546
    %v548 = vpop.f32.mrf.mxu0
    %549 = vmatprep.mubr.f32.mxu0 0.0
    %550 = vmatmul.mubr.f32.gmra.mxu0 %v218
    %v551 = vpop.f32.mrf.mxu0
    %v552 = vadd.f32 %v106, %v551
    %v553 = vpop.f32.mrf.mxu0
    %554 = vmatprep.mubr.f32.mxu0 0.0
    %555 = vmatmul.mubr.f32.gmra.mxu0 %v221
    %v556 = vpop.f32.mrf.mxu0
    %v557 = vadd.f32 %v106, %v556
    %v558 = vpop.f32.mrf.mxu0
    %559 = vmatprep.mubr.f32.mxu0 0.0
    %560 = vmatmul.mubr.f32.gmra.mxu0 %v224
    %v561 = vpop.f32.mrf.mxu0
    %v562 = vadd.f32 %v106, %v561
    %v563 = vpop.f32.mrf.mxu0
    %564 = vmatprep.mubr.f32.mxu0 0.0
    %565 = vmatmul.mubr.f32.gmra.mxu0 %v227
    %v566 = vpop.f32.mrf.mxu0
    %v567 = vadd.f32 %v106, %v566
    %v568 = vpop.f32.mrf.mxu0
    %569 = vmatprep.mubr.f32.mxu0 0.0
    %570 = vmatmul.mubr.f32.gmra.mxu0 %v230
    %v571 = vpop.f32.mrf.mxu0
    %v572 = vadd.f32 %v106, %v571
    %v573 = vpop.f32.mrf.mxu0
    %574 = vmatprep.mubr.f32.mxu0 0.0
    %575 = vmatmul.mubr.f32.gmra.mxu0 %v233
    %v576 = vpop.f32.mrf.mxu0
    %v577 = vadd.f32 %v106, %v576
    %v578 = vpop.f32.mrf.mxu0
    %579 = vmatprep.mubr.f32.mxu0 0.0
    %580 = vmatmul.mubr.f32.gmra.mxu0 %v236
    %v581 = vpop.f32.mrf.mxu0
    %v582 = vadd.f32 %v106, %v581
    %v583 = vpop.f32.mrf.mxu0
    %584 = vmatprep.mubr.f32.mxu0 0.0
    %585 = vmatmul.mubr.f32.gmra.mxu0 %v239
    %v586 = vpop.f32.mrf.mxu0
    %v587 = vadd.f32 %v106, %v586
    %v588 = vpop.f32.mrf.mxu0
    %589 = vmatprep.mubr.f32.mxu0 0.0
    %590 = vmatmul.mubr.f32.gmra.mxu0 %v242
    %v591 = vpop.f32.mrf.mxu0
    %v592 = vadd.f32 %v106, %v591
    %v593 = vpop.f32.mrf.mxu0
    %594 = vmatprep.mubr.f32.mxu0 0.0
    %595 = vmatmul.mubr.f32.gmra.mxu0 %v245
    %v596 = vpop.f32.mrf.mxu0
    %v597 = vadd.f32 %v106, %v596
    %v598 = vpop.f32.mrf.mxu0
    %599 = vmatprep.mubr.f32.mxu0 0.0
    %600 = vmatmul.mubr.f32.gmra.mxu0 %v248
    %v601 = vpop.f32.mrf.mxu0
    %v602 = vadd.f32 %v106, %v601
    %v603 = vpop.f32.mrf.mxu0
    %604 = vmatprep.mubr.f32.mxu0 0.0
    %605 = vmatmul.mubr.f32.gmra.mxu0 %v251
    %v606 = vpop.f32.mrf.mxu0
    %v607 = vadd.f32 %v106, %v606
    %v608 = vpop.f32.mrf.mxu0
    %609 = vmatprep.mubr.f32.mxu0 0.0
    %610 = vmatmul.mubr.f32.gmra.mxu0 %v254
    %v611 = vpop.f32.mrf.mxu0
    %v612 = vadd.f32 %v106, %v611
    %v613 = vpop.f32.mrf.mxu0
    %614 = vmatprep.mubr.f32.mxu0 0.0
    %615 = vmatmul.mubr.f32.gmra.mxu0 %v257
    %v616 = vpop.f32.mrf.mxu0
    %v617 = vadd.f32 %v106, %v616
    %v618 = vpop.f32.mrf.mxu0
    %619 = vmatprep.mubr.f32.mxu0 0.0
    %620 = vmatmul.mubr.f32.gmra.mxu0 %v260
    %v621 = vpop.f32.mrf.mxu0
    %v622 = vadd.f32 %v106, %v621
    %v623 = vpop.f32.mrf.mxu0
    %624 = vmatprep.mubr.f32.mxu0 0.0
    %625 = vmatmul.mubr.f32.gmra.mxu0 %v263
    %v626 = vpop.f32.mrf.mxu0
    %v627 = vadd.f32 %v106, %v626
    %v628 = vpop.f32.mrf.mxu0
    %629 = vmatprep.mubr.f32.mxu0 0.0
    %630 = vmatmul.mubr.f32.gmra.mxu0 %v266
    %v631 = vpop.f32.mrf.mxu0
    %v632 = vadd.f32 %v106, %v631
    %v633 = vpop.f32.mrf.mxu0
    %634 = vmatprep.mubr.f32.mxu0 0.0
    %635 = vmatmul.mubr.f32.gmra.mxu0 %v269
    %v636 = vpop.f32.mrf.mxu0
    %v637 = vadd.f32 %v106, %v636
    %v638 = vpop.f32.mrf.mxu0
    %639 = vmatprep.mubr.f32.mxu0 0.0
    %640 = vmatmul.mubr.f32.gmra.mxu0 %v272
    %v641 = vpop.f32.mrf.mxu0
    %v642 = vadd.f32 %v106, %v641
    %v643 = vpop.f32.mrf.mxu0
    %644 = vmatprep.mubr.f32.mxu0 0.0
    %645 = vmatmul.mubr.f32.gmra.mxu0 %v275
    %v646 = vpop.f32.mrf.mxu0
    %v647 = vadd.f32 %v106, %v646
    %v648 = vpop.f32.mrf.mxu0
    %649 = vmatprep.mubr.f32.mxu0 0.0
    %650 = vmatmul.mubr.f32.gmra.mxu0 %v278
    %v651 = vpop.f32.mrf.mxu0
    %v652 = vadd.f32 %v106, %v651
    %v653 = vpop.f32.mrf.mxu0
    %654 = vmatprep.mubr.f32.mxu0 0.0
    %655 = vmatmul.mubr.f32.gmra.mxu0 %v281
    %v656 = vpop.f32.mrf.mxu0
    %v657 = vadd.f32 %v106, %v656
    %v658 = vpop.f32.mrf.mxu0
    %659 = vmatprep.mubr.f32.mxu0 0.0
    %660 = vmatmul.mubr.f32.gmra.mxu0 %v284
    %v661 = vpop.f32.mrf.mxu0
    %v662 = vadd.f32 %v106, %v661
    %v663 = vpop.f32.mrf.mxu0
    %664 = vmatprep.mubr.f32.mxu0 0.0
    %665 = vmatmul.mubr.f32.gmra.mxu0 %v287
    %v666 = vpop.f32.mrf.mxu0
    %v667 = vadd.f32 %v106, %v666
    %v668 = vpop.f32.mrf.mxu0
    %669 = vmatprep.mubr.f32.mxu0 0.0
    %670 = vmatmul.mubr.f32.gmra.mxu0 %v290
    %v671 = vpop.f32.mrf.mxu0
    %v672 = vadd.f32 %v106, %v671
    %v673 = vpop.f32.mrf.mxu0
    %674 = vmatprep.mubr.f32.mxu0 0.0
    %675 = vmatmul.mubr.f32.gmra.mxu0 %v293
    %v676 = vpop.f32.mrf.mxu0
    %v677 = vadd.f32 %v106, %v676
    %v678 = vpop.f32.mrf.mxu0
    %679 = vmatprep.mubr.f32.mxu0 0.0
    %680 = vmatmul.mubr.f32.gmra.mxu0 %v296
    %v681 = vpop.f32.mrf.mxu0
    %v682 = vadd.f32 %v106, %v681
    %v683 = vpop.f32.mrf.mxu0
    %684 = vmatprep.mubr.f32.mxu0 0.0
    %685 = vmatmul.mubr.f32.gmra.mxu0 %v299
    %v686 = vpop.f32.mrf.mxu0
    %v687 = vadd.f32 %v106, %v686
    %v688 = vpop.f32.mrf.mxu0
    %689 = vdwg.mxu0
    %v690 = vmax.f32 %v372, 0.0
    %v691 = vmax.f32 %v377, 0.0
    %v692 = vmax.f32 %v382, 0.0
    %v693 = vmax.f32 %v387, 0.0
    %v694 = vmax.f32 %v392, 0.0
    %v695 = vmax.f32 %v397, 0.0
    %v696 = vmax.f32 %v402, 0.0
    %v697 = vmax.f32 %v407, 0.0
    %v698 = vmax.f32 %v412, 0.0
    %v699 = vmax.f32 %v417, 0.0
    %v700 = vmax.f32 %v422, 0.0
    %v701 = vmax.f32 %v427, 0.0
    %v702 = vmax.f32 %v432, 0.0
    %v703 = vmax.f32 %v437, 0.0
    %v704 = vmax.f32 %v442, 0.0
    %v705 = vmax.f32 %v447, 0.0
    %v706 = vmax.f32 %v452, 0.0
    %v707 = vmax.f32 %v457, 0.0
    %v708 = vmax.f32 %v462, 0.0
    %v709 = vmax.f32 %v467, 0.0
    %v710 = vmax.f32 %v472, 0.0
    %v711 = vmax.f32 %v477, 0.0
    %v712 = vmax.f32 %v482, 0.0
    %v713 = vmax.f32 %v487, 0.0
    %v714 = vmax.f32 %v492, 0.0
    %v715 = vmax.f32 %v497, 0.0
    %v716 = vmax.f32 %v502, 0.0
    %v717 = vmax.f32 %v507, 0.0
    %v718 = vmax.f32 %v512, 0.0
    %v719 = vmax.f32 %v517, 0.0
    %v720 = vmax.f32 %v522, 0.0
    %v721 = vmax.f32 %v527, 0.0
    %v722 = vmax.f32 %v532, 0.0
    %v723 = vmax.f32 %v537, 0.0
    %v724 = vmax.f32 %v542, 0.0
    %v725 = vmax.f32 %v547, 0.0
    %v726 = vmax.f32 %v552, 0.0
    %v727 = vmax.f32 %v557, 0.0
    %v728 = vmax.f32 %v562, 0.0
    %v729 = vmax.f32 %v567, 0.0
    %v730 = vmax.f32 %v572, 0.0
    %v731 = vmax.f32 %v577, 0.0
    %v732 = vmax.f32 %v582, 0.0
    %v733 = vmax.f32 %v587, 0.0
    %v734 = vmax.f32 %v592, 0.0
    %v735 = vmax.f32 %v597, 0.0
    %v736 = vmax.f32 %v602, 0.0
    %v737 = vmax.f32 %v607, 0.0
    %v738 = vmax.f32 %v612, 0.0
    %v739 = vmax.f32 %v617, 0.0
    %v740 = vmax.f32 %v622, 0.0
    %v741 = vmax.f32 %v627, 0.0
    %v742 = vmax.f32 %v632, 0.0
    %v743 = vmax.f32 %v637, 0.0
    %v744 = vmax.f32 %v642, 0.0
    %v745 = vmax.f32 %v647, 0.0
    %v746 = vmax.f32 %v652, 0.0
    %v747 = vmax.f32 %v657, 0.0
    %v748 = vmax.f32 %v662, 0.0
    %v749 = vmax.f32 %v667, 0.0
    %v750 = vmax.f32 %v672, 0.0
    %v751 = vmax.f32 %v677, 0.0
    %v752 = vmax.f32 %v682, 0.0
    %v753 = vmax.f32 %v687, 0.0
    %v754 = vld [vmem:[%s5] sm:$0xff]
    %v755 = vld [vmem:[%s5 + $0x8] sm:$0xff]
    %v756 = vld [vmem:[%s5 + $0x10] sm:$0xff]
    %v757 = vld [vmem:[%s5 + $0x18] sm:$0xff]
    %v758 = vld [vmem:[%s6] sm:$0x1]
    %v760 = vlaneseq
    %v761 = vshrl.u32 %v760, 7
    %v762 = vsub.s32 0, %v761
    %v763 = vrot.slane %v758, %v762
    %vm765 = vcmask 261120
    %v767 = vsel %vm765, %v690, 0
    %v770 = vsel %vm765, %v691, 0
    %v773 = vsel %vm765, %v692, 0
    %v776 = vsel %vm765, %v693, 0
    %v779 = vsel %vm765, %v694, 0
    %v782 = vsel %vm765, %v695, 0
    %v785 = vsel %vm765, %v696, 0
    %v788 = vsel %vm765, %v697, 0
    %v791 = vsel %vm765, %v698, 0
    %v794 = vsel %vm765, %v699, 0
    %v797 = vsel %vm765, %v700, 0
    %v800 = vsel %vm765, %v701, 0
    %v803 = vsel %vm765, %v702, 0
    %v806 = vsel %vm765, %v703, 0
    %v809 = vsel %vm765, %v704, 0
    %v812 = vsel %vm765, %v705, 0
    %v815 = vsel %vm765, %v706, 0
    %v818 = vsel %vm765, %v707, 0
    %v821 = vsel %vm765, %v708, 0
    %v824 = vsel %vm765, %v709, 0
    %v827 = vsel %vm765, %v710, 0
    %v830 = vsel %vm765, %v711, 0
    %v833 = vsel %vm765, %v712, 0
    %v836 = vsel %vm765, %v713, 0
    %v839 = vsel %vm765, %v714, 0
    %v842 = vsel %vm765, %v715, 0
    %v845 = vsel %vm765, %v716, 0
    %v848 = vsel %vm765, %v717, 0
    %v851 = vsel %vm765, %v718, 0
    %v854 = vsel %vm765, %v719, 0
    %v857 = vsel %vm765, %v720, 0
    %v860 = vsel %vm765, %v721, 0
    %v863 = vsel %vm765, %v722, 0
    %v866 = vsel %vm765, %v723, 0
    %v869 = vsel %vm765, %v724, 0
    %v872 = vsel %vm765, %v725, 0
    %v875 = vsel %vm765, %v726, 0
    %v878 = vsel %vm765, %v727, 0
    %v881 = vsel %vm765, %v728, 0
    %v884 = vsel %vm765, %v729, 0
    %v887 = vsel %vm765, %v730, 0
    %v890 = vsel %vm765, %v731, 0
    %v893 = vsel %vm765, %v732, 0
    %v896 = vsel %vm765, %v733, 0
    %v899 = vsel %vm765, %v734, 0
    %v902 = vsel %vm765, %v735, 0
    %v905 = vsel %vm765, %v736, 0
    %v908 = vsel %vm765, %v737, 0
    %v911 = vsel %vm765, %v738, 0
    %v914 = vsel %vm765, %v739, 0
    %v917 = vsel %vm765, %v740, 0
    %v920 = vsel %vm765, %v741, 0
    %v923 = vsel %vm765, %v742, 0
    %v926 = vsel %vm765, %v743, 0
    %v929 = vsel %vm765, %v744, 0
    %v932 = vsel %vm765, %v745, 0
    %v935 = vsel %vm765, %v746, 0
    %v938 = vsel %vm765, %v747, 0
    %v941 = vsel %vm765, %v748, 0
    %v944 = vsel %vm765, %v749, 0
    %v947 = vsel %vm765, %v750, 0
    %v950 = vsel %vm765, %v751, 0
    %v953 = vsel %vm765, %v752, 0
    %v956 = vsel %vm765, %v753, 0
    %958 = vmatprep.subr.mxu0 0.0
    %959 = vmatpush1.msra.mxu0 0.0
    %960 = vmatprep.subr.mxu0 0.0
    %961 = vmatpush1.msra.mxu0 0.0
    %962 = vmatprep.subr.mxu0 0.0
    %963 = vmatpush1.msra.mxu0 0.0
    %964 = vmatprep.subr.mxu0 0.0
    %965 = vmatpush1.msra.mxu0 0.0
    %966 = vmatprep.subr.mxu0 0.0
    %967 = vmatpush1.msra.mxu0 0.0
    %968 = vmatprep.subr.mxu0 0.0
    %969 = vmatpush1.msra.mxu0 0.0
    %970 = vmatprep.subr.mxu0 0.0
    %971 = vmatpush1.msra.mxu0 0.0
    %972 = vmatprep.subr.mxu0 0.0
    %973 = vmatpush1.msra.mxu0 0.0
    %974 = vmatprep.subr.mxu0 0.0
    %975 = vmatpush1.msra.mxu0 0.0
    %976 = vmatprep.subr.mxu0 0.0
    %977 = vmatpush1.msra.mxu0 0.0
    %978 = vmatprep.subr.mxu0 0.0
    %979 = vmatpush1.msra.mxu0 0.0
    %980 = vmatprep.subr.mxu0 0.0
    %981 = vmatpush1.msra.mxu0 0.0
    %982 = vmatprep.subr.mxu0 0.0
    %983 = vmatpush1.msra.mxu0 %v757
    %984 = vmatprep.subr.mxu0 0.0
    %985 = vmatpush1.msra.mxu0 %v756
    %986 = vmatprep.subr.mxu0 0.0
    %987 = vmatpush1.msra.mxu0 %v755
    %988 = vmatprep.subr.mxu0 0.0
    %989 = vmatpush1.msra.mxu0 %v754
    %990 = vmatprep.subr.mxu0 0.0
    %991 = vmatpush2.msra.mxu0 0.0
    %992 = vmatprep.subr.mxu0 0.0
    %993 = vmatpush2.msra.mxu0 0.0
    %994 = vmatprep.subr.mxu0 0.0
    %995 = vmatpush2.msra.mxu0 0.0
    %996 = vmatprep.subr.mxu0 0.0
    %997 = vmatpush2.msra.mxu0 0.0
    %998 = vmatprep.subr.mxu0 0.0
    %999 = vmatpush2.msra.mxu0 0.0
    %1000 = vmatprep.subr.mxu0 0.0
    %1001 = vmatpush2.msra.mxu0 0.0
    %1002 = vmatprep.subr.mxu0 0.0
    %1003 = vmatpush2.msra.mxu0 0.0
    %1004 = vmatprep.subr.mxu0 0.0
    %1005 = vmatpush2.msra.mxu0 0.0
    %1006 = vmatprep.subr.mxu0 0.0
    %1007 = vmatpush2.msra.mxu0 0.0
    %1008 = vmatprep.subr.mxu0 0.0
    %1009 = vmatpush2.msra.mxu0 0.0
    %1010 = vmatprep.subr.mxu0 0.0
    %1011 = vmatpush2.msra.mxu0 0.0
    %1012 = vmatprep.subr.mxu0 0.0
    %1013 = vmatpush2.msra.mxu0 0.0
    %1014 = vmatprep.subr.mxu0 0.0
    %1015 = vmatpush2.msra.mxu0 0.0
    %1016 = vmatprep.subr.mxu0 0.0
    %1017 = vmatpush2.msra.mxu0 0.0
    %1018 = vmatprep.subr.mxu0 0.0
    %1019 = vmatpush2.msra.mxu0 0.0
    %1020 = vmatprep.subr.mxu0 0.0
    %1021 = vmatpush2.msra.mxu0 0.0
    %1022 = vmatprep.mubr.f32.mxu0 0.0
    %1023 = vmatmul.mubr.f32.gmra.mxu0 %v767
    %v1024 = vpop.f32.mrf.mxu0
    %v1025 = vadd.f32 %v763, %v1024
    %v1026 = vpop.f32.mrf.mxu0
    %1027 = vmatprep.mubr.f32.mxu0 0.0
    %1028 = vmatmul.mubr.f32.gmra.mxu0 %v770
    %v1029 = vpop.f32.mrf.mxu0
    %v1030 = vadd.f32 %v763, %v1029
    %v1031 = vpop.f32.mrf.mxu0
    %1032 = vmatprep.mubr.f32.mxu0 0.0
    %1033 = vmatmul.mubr.f32.gmra.mxu0 %v773
    %v1034 = vpop.f32.mrf.mxu0
    %v1035 = vadd.f32 %v763, %v1034
    %v1036 = vpop.f32.mrf.mxu0
    %1037 = vmatprep.mubr.f32.mxu0 0.0
    %1038 = vmatmul.mubr.f32.gmra.mxu0 %v776
    %v1039 = vpop.f32.mrf.mxu0
    %v1040 = vadd.f32 %v763, %v1039
    %v1041 = vpop.f32.mrf.mxu0
    %1042 = vmatprep.mubr.f32.mxu0 0.0
    %1043 = vmatmul.mubr.f32.gmra.mxu0 %v779
    %v1044 = vpop.f32.mrf.mxu0
    %v1045 = vadd.f32 %v763, %v1044
    %v1046 = vpop.f32.mrf.mxu0
    %1047 = vmatprep.mubr.f32.mxu0 0.0
    %1048 = vmatmul.mubr.f32.gmra.mxu0 %v782
    %v1049 = vpop.f32.mrf.mxu0
    %v1050 = vadd.f32 %v763, %v1049
    %v1051 = vpop.f32.mrf.mxu0
    %1052 = vmatprep.mubr.f32.mxu0 0.0
    %1053 = vmatmul.mubr.f32.gmra.mxu0 %v785
    %v1054 = vpop.f32.mrf.mxu0
    %v1055 = vadd.f32 %v763, %v1054
    %v1056 = vpop.f32.mrf.mxu0
    %1057 = vmatprep.mubr.f32.mxu0 0.0
    %1058 = vmatmul.mubr.f32.gmra.mxu0 %v788
    %v1059 = vpop.f32.mrf.mxu0
    %v1060 = vadd.f32 %v763, %v1059
    %v1061 = vpop.f32.mrf.mxu0
    %1062 = vmatprep.mubr.f32.mxu0 0.0
    %1063 = vmatmul.mubr.f32.gmra.mxu0 %v791
    %v1064 = vpop.f32.mrf.mxu0
    %v1065 = vadd.f32 %v763, %v1064
    %v1066 = vpop.f32.mrf.mxu0
    %1067 = vmatprep.mubr.f32.mxu0 0.0
    %1068 = vmatmul.mubr.f32.gmra.mxu0 %v794
    %v1069 = vpop.f32.mrf.mxu0
    %v1070 = vadd.f32 %v763, %v1069
    %v1071 = vpop.f32.mrf.mxu0
    %1072 = vmatprep.mubr.f32.mxu0 0.0
    %1073 = vmatmul.mubr.f32.gmra.mxu0 %v797
    %v1074 = vpop.f32.mrf.mxu0
    %v1075 = vadd.f32 %v763, %v1074
    %v1076 = vpop.f32.mrf.mxu0
    %1077 = vmatprep.mubr.f32.mxu0 0.0
    %1078 = vmatmul.mubr.f32.gmra.mxu0 %v800
    %v1079 = vpop.f32.mrf.mxu0
    %v1080 = vadd.f32 %v763, %v1079
    %v1081 = vpop.f32.mrf.mxu0
    %1082 = vmatprep.mubr.f32.mxu0 0.0
    %1083 = vmatmul.mubr.f32.gmra.mxu0 %v803
    %v1084 = vpop.f32.mrf.mxu0
    %v1085 = vadd.f32 %v763, %v1084
    %v1086 = vpop.f32.mrf.mxu0
    %1087 = vmatprep.mubr.f32.mxu0 0.0
    %1088 = vmatmul.mubr.f32.gmra.mxu0 %v806
    %v1089 = vpop.f32.mrf.mxu0
    %v1090 = vadd.f32 %v763, %v1089
    %v1091 = vpop.f32.mrf.mxu0
    %1092 = vmatprep.mubr.f32.mxu0 0.0
    %1093 = vmatmul.mubr.f32.gmra.mxu0 %v809
    %v1094 = vpop.f32.mrf.mxu0
    %v1095 = vadd.f32 %v763, %v1094
    %v1096 = vpop.f32.mrf.mxu0
    %1097 = vmatprep.mubr.f32.mxu0 0.0
    %1098 = vmatmul.mubr.f32.gmra.mxu0 %v812
    %v1099 = vpop.f32.mrf.mxu0
    %v1100 = vadd.f32 %v763, %v1099
    %v1101 = vpop.f32.mrf.mxu0
    %1102 = vmatprep.mubr.f32.mxu0 0.0
    %1103 = vmatmul.mubr.f32.gmra.mxu0 %v815
    %v1104 = vpop.f32.mrf.mxu0
    %v1105 = vadd.f32 %v763, %v1104
    %v1106 = vpop.f32.mrf.mxu0
    %1107 = vmatprep.mubr.f32.mxu0 0.0
    %1108 = vmatmul.mubr.f32.gmra.mxu0 %v818
    %v1109 = vpop.f32.mrf.mxu0
    %v1110 = vadd.f32 %v763, %v1109
    %v1111 = vpop.f32.mrf.mxu0
    %1112 = vmatprep.mubr.f32.mxu0 0.0
    %1113 = vmatmul.mubr.f32.gmra.mxu0 %v821
    %v1114 = vpop.f32.mrf.mxu0
    %v1115 = vadd.f32 %v763, %v1114
    %v1116 = vpop.f32.mrf.mxu0
    %1117 = vmatprep.mubr.f32.mxu0 0.0
    %1118 = vmatmul.mubr.f32.gmra.mxu0 %v824
    %v1119 = vpop.f32.mrf.mxu0
    %v1120 = vadd.f32 %v763, %v1119
    %v1121 = vpop.f32.mrf.mxu0
    %1122 = vmatprep.mubr.f32.mxu0 0.0
    %1123 = vmatmul.mubr.f32.gmra.mxu0 %v827
    %v1124 = vpop.f32.mrf.mxu0
    %v1125 = vadd.f32 %v763, %v1124
    %v1126 = vpop.f32.mrf.mxu0
    %1127 = vmatprep.mubr.f32.mxu0 0.0
    %1128 = vmatmul.mubr.f32.gmra.mxu0 %v830
    %v1129 = vpop.f32.mrf.mxu0
    %v1130 = vadd.f32 %v763, %v1129
    %v1131 = vpop.f32.mrf.mxu0
    %1132 = vmatprep.mubr.f32.mxu0 0.0
    %1133 = vmatmul.mubr.f32.gmra.mxu0 %v833
    %v1134 = vpop.f32.mrf.mxu0
    %v1135 = vadd.f32 %v763, %v1134
    %v1136 = vpop.f32.mrf.mxu0
    %1137 = vmatprep.mubr.f32.mxu0 0.0
    %1138 = vmatmul.mubr.f32.gmra.mxu0 %v836
    %v1139 = vpop.f32.mrf.mxu0
    %v1140 = vadd.f32 %v763, %v1139
    %v1141 = vpop.f32.mrf.mxu0
    %1142 = vmatprep.mubr.f32.mxu0 0.0
    %1143 = vmatmul.mubr.f32.gmra.mxu0 %v839
    %v1144 = vpop.f32.mrf.mxu0
    %v1145 = vadd.f32 %v763, %v1144
    %v1146 = vpop.f32.mrf.mxu0
    %1147 = vmatprep.mubr.f32.mxu0 0.0
    %1148 = vmatmul.mubr.f32.gmra.mxu0 %v842
    %v1149 = vpop.f32.mrf.mxu0
    %v1150 = vadd.f32 %v763, %v1149
    %v1151 = vpop.f32.mrf.mxu0
    %1152 = vmatprep.mubr.f32.mxu0 0.0
    %1153 = vmatmul.mubr.f32.gmra.mxu0 %v845
    %v1154 = vpop.f32.mrf.mxu0
    %v1155 = vadd.f32 %v763, %v1154
    %v1156 = vpop.f32.mrf.mxu0
    %1157 = vmatprep.mubr.f32.mxu0 0.0
    %1158 = vmatmul.mubr.f32.gmra.mxu0 %v848
    %v1159 = vpop.f32.mrf.mxu0
    %v1160 = vadd.f32 %v763, %v1159
    %v1161 = vpop.f32.mrf.mxu0
    %1162 = vmatprep.mubr.f32.mxu0 0.0
    %1163 = vmatmul.mubr.f32.gmra.mxu0 %v851
    %v1164 = vpop.f32.mrf.mxu0
    %v1165 = vadd.f32 %v763, %v1164
    %v1166 = vpop.f32.mrf.mxu0
    %1167 = vmatprep.mubr.f32.mxu0 0.0
    %1168 = vmatmul.mubr.f32.gmra.mxu0 %v854
    %v1169 = vpop.f32.mrf.mxu0
    %v1170 = vadd.f32 %v763, %v1169
    %v1171 = vpop.f32.mrf.mxu0
    %1172 = vmatprep.mubr.f32.mxu0 0.0
    %1173 = vmatmul.mubr.f32.gmra.mxu0 %v857
    %v1174 = vpop.f32.mrf.mxu0
    %v1175 = vadd.f32 %v763, %v1174
    %v1176 = vpop.f32.mrf.mxu0
    %1177 = vmatprep.mubr.f32.mxu0 0.0
    %1178 = vmatmul.mubr.f32.gmra.mxu0 %v860
    %v1179 = vpop.f32.mrf.mxu0
    %v1180 = vadd.f32 %v763, %v1179
    %v1181 = vpop.f32.mrf.mxu0
    %1182 = vmatprep.mubr.f32.mxu0 0.0
    %1183 = vmatmul.mubr.f32.gmra.mxu0 %v863
    %v1184 = vpop.f32.mrf.mxu0
    %v1185 = vadd.f32 %v763, %v1184
    %v1186 = vpop.f32.mrf.mxu0
    %1187 = vmatprep.mubr.f32.mxu0 0.0
    %1188 = vmatmul.mubr.f32.gmra.mxu0 %v866
    %v1189 = vpop.f32.mrf.mxu0
    %v1190 = vadd.f32 %v763, %v1189
    %v1191 = vpop.f32.mrf.mxu0
    %1192 = vmatprep.mubr.f32.mxu0 0.0
    %1193 = vmatmul.mubr.f32.gmra.mxu0 %v869
    %v1194 = vpop.f32.mrf.mxu0
    %v1195 = vadd.f32 %v763, %v1194
    %v1196 = vpop.f32.mrf.mxu0
    %1197 = vmatprep.mubr.f32.mxu0 0.0
    %1198 = vmatmul.mubr.f32.gmra.mxu0 %v872
    %v1199 = vpop.f32.mrf.mxu0
    %v1200 = vadd.f32 %v763, %v1199
    %v1201 = vpop.f32.mrf.mxu0
    %1202 = vmatprep.mubr.f32.mxu0 0.0
    %1203 = vmatmul.mubr.f32.gmra.mxu0 %v875
    %v1204 = vpop.f32.mrf.mxu0
    %v1205 = vadd.f32 %v763, %v1204
    %v1206 = vpop.f32.mrf.mxu0
    %1207 = vmatprep.mubr.f32.mxu0 0.0
    %1208 = vmatmul.mubr.f32.gmra.mxu0 %v878
    %v1209 = vpop.f32.mrf.mxu0
    %v1210 = vadd.f32 %v763, %v1209
    %v1211 = vpop.f32.mrf.mxu0
    %1212 = vmatprep.mubr.f32.mxu0 0.0
    %1213 = vmatmul.mubr.f32.gmra.mxu0 %v881
    %v1214 = vpop.f32.mrf.mxu0
    %v1215 = vadd.f32 %v763, %v1214
    %v1216 = vpop.f32.mrf.mxu0
    %1217 = vmatprep.mubr.f32.mxu0 0.0
    %1218 = vmatmul.mubr.f32.gmra.mxu0 %v884
    %v1219 = vpop.f32.mrf.mxu0
    %v1220 = vadd.f32 %v763, %v1219
    %v1221 = vpop.f32.mrf.mxu0
    %1222 = vmatprep.mubr.f32.mxu0 0.0
    %1223 = vmatmul.mubr.f32.gmra.mxu0 %v887
    %v1224 = vpop.f32.mrf.mxu0
    %v1225 = vadd.f32 %v763, %v1224
    %v1226 = vpop.f32.mrf.mxu0
    %1227 = vmatprep.mubr.f32.mxu0 0.0
    %1228 = vmatmul.mubr.f32.gmra.mxu0 %v890
    %v1229 = vpop.f32.mrf.mxu0
    %v1230 = vadd.f32 %v763, %v1229
    %v1231 = vpop.f32.mrf.mxu0
    %1232 = vmatprep.mubr.f32.mxu0 0.0
    %1233 = vmatmul.mubr.f32.gmra.mxu0 %v893
    %v1234 = vpop.f32.mrf.mxu0
    %v1235 = vadd.f32 %v763, %v1234
    %v1236 = vpop.f32.mrf.mxu0
    %1237 = vmatprep.mubr.f32.mxu0 0.0
    %1238 = vmatmul.mubr.f32.gmra.mxu0 %v896
    %v1239 = vpop.f32.mrf.mxu0
    %v1240 = vadd.f32 %v763, %v1239
    %v1241 = vpop.f32.mrf.mxu0
    %1242 = vmatprep.mubr.f32.mxu0 0.0
    %1243 = vmatmul.mubr.f32.gmra.mxu0 %v899
    %v1244 = vpop.f32.mrf.mxu0
    %v1245 = vadd.f32 %v763, %v1244
    %v1246 = vpop.f32.mrf.mxu0
    %1247 = vmatprep.mubr.f32.mxu0 0.0
    %1248 = vmatmul.mubr.f32.gmra.mxu0 %v902
    %v1249 = vpop.f32.mrf.mxu0
    %v1250 = vadd.f32 %v763, %v1249
    %v1251 = vpop.f32.mrf.mxu0
    %1252 = vmatprep.mubr.f32.mxu0 0.0
    %1253 = vmatmul.mubr.f32.gmra.mxu0 %v905
    %v1254 = vpop.f32.mrf.mxu0
    %v1255 = vadd.f32 %v763, %v1254
    %v1256 = vpop.f32.mrf.mxu0
    %1257 = vmatprep.mubr.f32.mxu0 0.0
    %1258 = vmatmul.mubr.f32.gmra.mxu0 %v908
    %v1259 = vpop.f32.mrf.mxu0
    %v1260 = vadd.f32 %v763, %v1259
    %v1261 = vpop.f32.mrf.mxu0
    %1262 = vmatprep.mubr.f32.mxu0 0.0
    %1263 = vmatmul.mubr.f32.gmra.mxu0 %v911
    %v1264 = vpop.f32.mrf.mxu0
    %v1265 = vadd.f32 %v763, %v1264
    %v1266 = vpop.f32.mrf.mxu0
    %1267 = vmatprep.mubr.f32.mxu0 0.0
    %1268 = vmatmul.mubr.f32.gmra.mxu0 %v914
    %v1269 = vpop.f32.mrf.mxu0
    %v1270 = vadd.f32 %v763, %v1269
    %v1271 = vpop.f32.mrf.mxu0
    %1272 = vmatprep.mubr.f32.mxu0 0.0
    %1273 = vmatmul.mubr.f32.gmra.mxu0 %v917
    %v1274 = vpop.f32.mrf.mxu0
    %v1275 = vadd.f32 %v763, %v1274
    %v1276 = vpop.f32.mrf.mxu0
    %1277 = vmatprep.mubr.f32.mxu0 0.0
    %1278 = vmatmul.mubr.f32.gmra.mxu0 %v920
    %v1279 = vpop.f32.mrf.mxu0
    %v1280 = vadd.f32 %v763, %v1279
    %v1281 = vpop.f32.mrf.mxu0
    %1282 = vmatprep.mubr.f32.mxu0 0.0
    %1283 = vmatmul.mubr.f32.gmra.mxu0 %v923
    %v1284 = vpop.f32.mrf.mxu0
    %v1285 = vadd.f32 %v763, %v1284
    %v1286 = vpop.f32.mrf.mxu0
    %1287 = vmatprep.mubr.f32.mxu0 0.0
    %1288 = vmatmul.mubr.f32.gmra.mxu0 %v926
    %v1289 = vpop.f32.mrf.mxu0
    %v1290 = vadd.f32 %v763, %v1289
    %v1291 = vpop.f32.mrf.mxu0
    %1292 = vmatprep.mubr.f32.mxu0 0.0
    %1293 = vmatmul.mubr.f32.gmra.mxu0 %v929
    %v1294 = vpop.f32.mrf.mxu0
    %v1295 = vadd.f32 %v763, %v1294
    %v1296 = vpop.f32.mrf.mxu0
    %1297 = vmatprep.mubr.f32.mxu0 0.0
    %1298 = vmatmul.mubr.f32.gmra.mxu0 %v932
    %v1299 = vpop.f32.mrf.mxu0
    %v1300 = vadd.f32 %v763, %v1299
    %v1301 = vpop.f32.mrf.mxu0
    %1302 = vmatprep.mubr.f32.mxu0 0.0
    %1303 = vmatmul.mubr.f32.gmra.mxu0 %v935
    %v1304 = vpop.f32.mrf.mxu0
    %v1305 = vadd.f32 %v763, %v1304
    %v1306 = vpop.f32.mrf.mxu0
    %1307 = vmatprep.mubr.f32.mxu0 0.0
    %1308 = vmatmul.mubr.f32.gmra.mxu0 %v938
    %v1309 = vpop.f32.mrf.mxu0
    %v1310 = vadd.f32 %v763, %v1309
    %v1311 = vpop.f32.mrf.mxu0
    %1312 = vmatprep.mubr.f32.mxu0 0.0
    %1313 = vmatmul.mubr.f32.gmra.mxu0 %v941
    %v1314 = vpop.f32.mrf.mxu0
    %v1315 = vadd.f32 %v763, %v1314
    %v1316 = vpop.f32.mrf.mxu0
    %1317 = vmatprep.mubr.f32.mxu0 0.0
    %1318 = vmatmul.mubr.f32.gmra.mxu0 %v944
    %v1319 = vpop.f32.mrf.mxu0
    %v1320 = vadd.f32 %v763, %v1319
    %v1321 = vpop.f32.mrf.mxu0
    %1322 = vmatprep.mubr.f32.mxu0 0.0
    %1323 = vmatmul.mubr.f32.gmra.mxu0 %v947
    %v1324 = vpop.f32.mrf.mxu0
    %v1325 = vadd.f32 %v763, %v1324
    %v1326 = vpop.f32.mrf.mxu0
    %1327 = vmatprep.mubr.f32.mxu0 0.0
    %1328 = vmatmul.mubr.f32.gmra.mxu0 %v950
    %v1329 = vpop.f32.mrf.mxu0
    %v1330 = vadd.f32 %v763, %v1329
    %v1331 = vpop.f32.mrf.mxu0
    %1332 = vmatprep.mubr.f32.mxu0 0.0
    %1333 = vmatmul.mubr.f32.gmra.mxu0 %v953
    %v1334 = vpop.f32.mrf.mxu0
    %v1335 = vadd.f32 %v763, %v1334
    %v1336 = vpop.f32.mrf.mxu0
    %1337 = vmatprep.mubr.f32.mxu0 0.0
    %1338 = vmatmul.mubr.f32.gmra.mxu0 %v956
    %v1339 = vpop.f32.mrf.mxu0
    %v1340 = vadd.f32 %v763, %v1339
    %v1341 = vpop.f32.mrf.mxu0
    %1342 = vdwg.mxu0
    %vm1343 = vcmask 31744
    %1344 = vst.msk [vmem:[%s7] sm:$0xff] %vm1343, %v1025
    %1345 = vst.msk [vmem:[%s7 + $0x8] sm:$0xff] %vm1343, %v1030
    %1346 = vst.msk [vmem:[%s7 + $0x10] sm:$0xff] %vm1343, %v1035
    %1347 = vst.msk [vmem:[%s7 + $0x18] sm:$0xff] %vm1343, %v1040
    %1348 = vst.msk [vmem:[%s7 + $0x20] sm:$0xff] %vm1343, %v1045
    %1349 = vst.msk [vmem:[%s7 + $0x28] sm:$0xff] %vm1343, %v1050
    %1350 = vst.msk [vmem:[%s7 + $0x30] sm:$0xff] %vm1343, %v1055
    %1351 = vst.msk [vmem:[%s7 + $0x38] sm:$0xff] %vm1343, %v1060
    %1352 = vst.msk [vmem:[%s7 + $0x40] sm:$0xff] %vm1343, %v1065
    %1353 = vst.msk [vmem:[%s7 + $0x48] sm:$0xff] %vm1343, %v1070
    %1354 = vst.msk [vmem:[%s7 + $0x50] sm:$0xff] %vm1343, %v1075
    %1355 = vst.msk [vmem:[%s7 + $0x58] sm:$0xff] %vm1343, %v1080
    %1356 = vst.msk [vmem:[%s7 + $0x60] sm:$0xff] %vm1343, %v1085
    %1357 = vst.msk [vmem:[%s7 + $0x68] sm:$0xff] %vm1343, %v1090
    %1358 = vst.msk [vmem:[%s7 + $0x70] sm:$0xff] %vm1343, %v1095
    %1359 = vst.msk [vmem:[%s7 + $0x78] sm:$0xff] %vm1343, %v1100
    %1360 = vst.msk [vmem:[%s7 + $0x80] sm:$0xff] %vm1343, %v1105
    %1361 = vst.msk [vmem:[%s7 + $0x88] sm:$0xff] %vm1343, %v1110
    %1362 = vst.msk [vmem:[%s7 + $0x90] sm:$0xff] %vm1343, %v1115
    %1363 = vst.msk [vmem:[%s7 + $0x98] sm:$0xff] %vm1343, %v1120
    %1364 = vst.msk [vmem:[%s7 + $0xa0] sm:$0xff] %vm1343, %v1125
    %1365 = vst.msk [vmem:[%s7 + $0xa8] sm:$0xff] %vm1343, %v1130
    %1366 = vst.msk [vmem:[%s7 + $0xb0] sm:$0xff] %vm1343, %v1135
    %1367 = vst.msk [vmem:[%s7 + $0xb8] sm:$0xff] %vm1343, %v1140
    %1368 = vst.msk [vmem:[%s7 + $0xc0] sm:$0xff] %vm1343, %v1145
    %1369 = vst.msk [vmem:[%s7 + $0xc8] sm:$0xff] %vm1343, %v1150
    %1370 = vst.msk [vmem:[%s7 + $0xd0] sm:$0xff] %vm1343, %v1155
    %1371 = vst.msk [vmem:[%s7 + $0xd8] sm:$0xff] %vm1343, %v1160
    %1372 = vst.msk [vmem:[%s7 + $0xe0] sm:$0xff] %vm1343, %v1165
    %1373 = vst.msk [vmem:[%s7 + $0xe8] sm:$0xff] %vm1343, %v1170
    %1374 = vst.msk [vmem:[%s7 + $0xf0] sm:$0xff] %vm1343, %v1175
    %1375 = vst.msk [vmem:[%s7 + $0xf8] sm:$0xff] %vm1343, %v1180
    %1376 = vst.msk [vmem:[%s7 + $0x100] sm:$0xff] %vm1343, %v1185
    %1377 = vst.msk [vmem:[%s7 + $0x108] sm:$0xff] %vm1343, %v1190
    %1378 = vst.msk [vmem:[%s7 + $0x110] sm:$0xff] %vm1343, %v1195
    %1379 = vst.msk [vmem:[%s7 + $0x118] sm:$0xff] %vm1343, %v1200
    %1380 = vst.msk [vmem:[%s7 + $0x120] sm:$0xff] %vm1343, %v1205
    %1381 = vst.msk [vmem:[%s7 + $0x128] sm:$0xff] %vm1343, %v1210
    %1382 = vst.msk [vmem:[%s7 + $0x130] sm:$0xff] %vm1343, %v1215
    %1383 = vst.msk [vmem:[%s7 + $0x138] sm:$0xff] %vm1343, %v1220
    %1384 = vst.msk [vmem:[%s7 + $0x140] sm:$0xff] %vm1343, %v1225
    %1385 = vst.msk [vmem:[%s7 + $0x148] sm:$0xff] %vm1343, %v1230
    %1386 = vst.msk [vmem:[%s7 + $0x150] sm:$0xff] %vm1343, %v1235
    %1387 = vst.msk [vmem:[%s7 + $0x158] sm:$0xff] %vm1343, %v1240
    %1388 = vst.msk [vmem:[%s7 + $0x160] sm:$0xff] %vm1343, %v1245
    %1389 = vst.msk [vmem:[%s7 + $0x168] sm:$0xff] %vm1343, %v1250
    %1390 = vst.msk [vmem:[%s7 + $0x170] sm:$0xff] %vm1343, %v1255
    %1391 = vst.msk [vmem:[%s7 + $0x178] sm:$0xff] %vm1343, %v1260
    %1392 = vst.msk [vmem:[%s7 + $0x180] sm:$0xff] %vm1343, %v1265
    %1393 = vst.msk [vmem:[%s7 + $0x188] sm:$0xff] %vm1343, %v1270
    %1394 = vst.msk [vmem:[%s7 + $0x190] sm:$0xff] %vm1343, %v1275
    %1395 = vst.msk [vmem:[%s7 + $0x198] sm:$0xff] %vm1343, %v1280
    %1396 = vst.msk [vmem:[%s7 + $0x1a0] sm:$0xff] %vm1343, %v1285
    %1397 = vst.msk [vmem:[%s7 + $0x1a8] sm:$0xff] %vm1343, %v1290
    %1398 = vst.msk [vmem:[%s7 + $0x1b0] sm:$0xff] %vm1343, %v1295
    %1399 = vst.msk [vmem:[%s7 + $0x1b8] sm:$0xff] %vm1343, %v1300
    %1400 = vst.msk [vmem:[%s7 + $0x1c0] sm:$0xff] %vm1343, %v1305
    %1401 = vst.msk [vmem:[%s7 + $0x1c8] sm:$0xff] %vm1343, %v1310
    %1402 = vst.msk [vmem:[%s7 + $0x1d0] sm:$0xff] %vm1343, %v1315
    %1403 = vst.msk [vmem:[%s7 + $0x1d8] sm:$0xff] %vm1343, %v1320
    %1404 = vst.msk [vmem:[%s7 + $0x1e0] sm:$0xff] %vm1343, %v1325
    %1405 = vst.msk [vmem:[%s7 + $0x1e8] sm:$0xff] %vm1343, %v1330
    %1406 = vst.msk [vmem:[%s7 + $0x1f0] sm:$0xff] %vm1343, %v1335
    %1407 = vst.msk [vmem:[%s7 + $0x1f8] sm:$0xff] %vm1343, %v1340
    %v1408 = vlaneseq
    %v1409 = vand.u32 %v1408, 127
    %v1410 = vld [vmem:[%s1] sm:$0xff]
    %v1411 = vld [vmem:[%s1 + $0x8] sm:$0xff]
    %v1412 = vld [vmem:[%s1 + $0x10] sm:$0xff]
    %v1413 = vld [vmem:[%s1 + $0x18] sm:$0xff]
    %v1414 = vld [vmem:[%s1 + $0x20] sm:$0xff]
    %v1415 = vld [vmem:[%s1 + $0x28] sm:$0xff]
    %v1416 = vld [vmem:[%s1 + $0x30] sm:$0xff]
    %v1417 = vld [vmem:[%s1 + $0x38] sm:$0xff]
    %v1418 = vld [vmem:[%s1 + $0x40] sm:$0xff]
    %v1419 = vld [vmem:[%s1 + $0x48] sm:$0xff]
    %v1420 = vld [vmem:[%s1 + $0x50] sm:$0xff]
    %v1421 = vld [vmem:[%s1 + $0x58] sm:$0xff]
    %v1422 = vld [vmem:[%s1 + $0x60] sm:$0xff]
    %v1423 = vld [vmem:[%s1 + $0x68] sm:$0xff]
    %v1424 = vld [vmem:[%s1 + $0x70] sm:$0xff]
    %v1425 = vld [vmem:[%s1 + $0x78] sm:$0xff]
    %v1426 = vld [vmem:[%s1 + $0x80] sm:$0xff]
    %v1427 = vld [vmem:[%s1 + $0x88] sm:$0xff]
    %v1428 = vld [vmem:[%s1 + $0x90] sm:$0xff]
    %v1429 = vld [vmem:[%s1 + $0x98] sm:$0xff]
    %v1430 = vld [vmem:[%s1 + $0xa0] sm:$0xff]
    %v1431 = vld [vmem:[%s1 + $0xa8] sm:$0xff]
    %v1432 = vld [vmem:[%s1 + $0xb0] sm:$0xff]
    %v1433 = vld [vmem:[%s1 + $0xb8] sm:$0xff]
    %v1434 = vld [vmem:[%s1 + $0xc0] sm:$0xff]
    %v1435 = vld [vmem:[%s1 + $0xc8] sm:$0xff]
    %v1436 = vld [vmem:[%s1 + $0xd0] sm:$0xff]
    %v1437 = vld [vmem:[%s1 + $0xd8] sm:$0xff]
    %v1438 = vld [vmem:[%s1 + $0xe0] sm:$0xff]
    %v1439 = vld [vmem:[%s1 + $0xe8] sm:$0xff]
    %v1440 = vld [vmem:[%s1 + $0xf0] sm:$0xff]
    %v1441 = vld [vmem:[%s1 + $0xf8] sm:$0xff]
    %v1442 = vld [vmem:[%s1 + $0x100] sm:$0xff]
    %v1443 = vld [vmem:[%s1 + $0x108] sm:$0xff]
    %v1444 = vld [vmem:[%s1 + $0x110] sm:$0xff]
    %v1445 = vld [vmem:[%s1 + $0x118] sm:$0xff]
    %v1446 = vld [vmem:[%s1 + $0x120] sm:$0xff]
    %v1447 = vld [vmem:[%s1 + $0x128] sm:$0xff]
    %v1448 = vld [vmem:[%s1 + $0x130] sm:$0xff]
    %v1449 = vld [vmem:[%s1 + $0x138] sm:$0xff]
    %v1450 = vld [vmem:[%s1 + $0x140] sm:$0xff]
    %v1451 = vld [vmem:[%s1 + $0x148] sm:$0xff]
    %v1452 = vld [vmem:[%s1 + $0x150] sm:$0xff]
    %v1453 = vld [vmem:[%s1 + $0x158] sm:$0xff]
    %v1454 = vld [vmem:[%s1 + $0x160] sm:$0xff]
    %v1455 = vld [vmem:[%s1 + $0x168] sm:$0xff]
    %v1456 = vld [vmem:[%s1 + $0x170] sm:$0xff]
    %v1457 = vld [vmem:[%s1 + $0x178] sm:$0xff]
    %v1458 = vld [vmem:[%s1 + $0x180] sm:$0xff]
    %v1459 = vld [vmem:[%s1 + $0x188] sm:$0xff]
    %v1460 = vld [vmem:[%s1 + $0x190] sm:$0xff]
    %v1461 = vld [vmem:[%s1 + $0x198] sm:$0xff]
    %v1462 = vld [vmem:[%s1 + $0x1a0] sm:$0xff]
    %v1463 = vld [vmem:[%s1 + $0x1a8] sm:$0xff]
    %v1464 = vld [vmem:[%s1 + $0x1b0] sm:$0xff]
    %v1465 = vld [vmem:[%s1 + $0x1b8] sm:$0xff]
    %v1466 = vld [vmem:[%s1 + $0x1c0] sm:$0xff]
    %v1467 = vld [vmem:[%s1 + $0x1c8] sm:$0xff]
    %v1468 = vld [vmem:[%s1 + $0x1d0] sm:$0xff]
    %v1469 = vld [vmem:[%s1 + $0x1d8] sm:$0xff]
    %v1470 = vld [vmem:[%s1 + $0x1e0] sm:$0xff]
    %v1471 = vld [vmem:[%s1 + $0x1e8] sm:$0xff]
    %v1472 = vld [vmem:[%s1 + $0x1f0] sm:$0xff]
    %v1473 = vld [vmem:[%s1 + $0x1f8] sm:$0xff]
    %1474 = vset.pattern.permute.xlu0 0
    %1475 = vperm.xlu0 %1474, %v1410
    %v1476 = vpop.permute.xlu0 %1475
    %1477 = vset.pattern.permute.xlu0 0
    %1478 = vperm.xlu0 %1477, %v1411
    %v1479 = vpop.permute.xlu0 %1478
    %1480 = vset.pattern.permute.xlu0 0
    %1481 = vperm.xlu0 %1480, %v1412
    %v1482 = vpop.permute.xlu0 %1481
    %1483 = vset.pattern.permute.xlu0 0
    %1484 = vperm.xlu0 %1483, %v1413
    %v1485 = vpop.permute.xlu0 %1484
    %1486 = vset.pattern.permute.xlu0 0
    %1487 = vperm.xlu0 %1486, %v1414
    %v1488 = vpop.permute.xlu0 %1487
    %1489 = vset.pattern.permute.xlu0 0
    %1490 = vperm.xlu0 %1489, %v1415
    %v1491 = vpop.permute.xlu0 %1490
    %1492 = vset.pattern.permute.xlu0 0
    %1493 = vperm.xlu0 %1492, %v1416
    %v1494 = vpop.permute.xlu0 %1493
    %1495 = vset.pattern.permute.xlu0 0
    %1496 = vperm.xlu0 %1495, %v1417
    %v1497 = vpop.permute.xlu0 %1496
    %1498 = vset.pattern.permute.xlu0 0
    %1499 = vperm.xlu0 %1498, %v1418
    %v1500 = vpop.permute.xlu0 %1499
    %1501 = vset.pattern.permute.xlu0 0
    %1502 = vperm.xlu0 %1501, %v1419
    %v1503 = vpop.permute.xlu0 %1502
    %1504 = vset.pattern.permute.xlu0 0
    %1505 = vperm.xlu0 %1504, %v1420
    %v1506 = vpop.permute.xlu0 %1505
    %1507 = vset.pattern.permute.xlu0 0
    %1508 = vperm.xlu0 %1507, %v1421
    %v1509 = vpop.permute.xlu0 %1508
    %1510 = vset.pattern.permute.xlu0 0
    %1511 = vperm.xlu0 %1510, %v1422
    %v1512 = vpop.permute.xlu0 %1511
    %1513 = vset.pattern.permute.xlu0 0
    %1514 = vperm.xlu0 %1513, %v1423
    %v1515 = vpop.permute.xlu0 %1514
    %1516 = vset.pattern.permute.xlu0 0
    %1517 = vperm.xlu0 %1516, %v1424
    %v1518 = vpop.permute.xlu0 %1517
    %1519 = vset.pattern.permute.xlu0 0
    %1520 = vperm.xlu0 %1519, %v1425
    %v1521 = vpop.permute.xlu0 %1520
    %1522 = vset.pattern.permute.xlu0 0
    %1523 = vperm.xlu0 %1522, %v1426
    %v1524 = vpop.permute.xlu0 %1523
    %1525 = vset.pattern.permute.xlu0 0
    %1526 = vperm.xlu0 %1525, %v1427
    %v1527 = vpop.permute.xlu0 %1526
    %1528 = vset.pattern.permute.xlu0 0
    %1529 = vperm.xlu0 %1528, %v1428
    %v1530 = vpop.permute.xlu0 %1529
    %1531 = vset.pattern.permute.xlu0 0
    %1532 = vperm.xlu0 %1531, %v1429
    %v1533 = vpop.permute.xlu0 %1532
    %1534 = vset.pattern.permute.xlu0 0
    %1535 = vperm.xlu0 %1534, %v1430
    %v1536 = vpop.permute.xlu0 %1535
    %1537 = vset.pattern.permute.xlu0 0
    %1538 = vperm.xlu0 %1537, %v1431
    %v1539 = vpop.permute.xlu0 %1538
    %1540 = vset.pattern.permute.xlu0 0
    %1541 = vperm.xlu0 %1540, %v1432
    %v1542 = vpop.permute.xlu0 %1541
    %1543 = vset.pattern.permute.xlu0 0
    %1544 = vperm.xlu0 %1543, %v1433
    %v1545 = vpop.permute.xlu0 %1544
    %1546 = vset.pattern.permute.xlu0 0
    %1547 = vperm.xlu0 %1546, %v1434
    %v1548 = vpop.permute.xlu0 %1547
    %1549 = vset.pattern.permute.xlu0 0
    %1550 = vperm.xlu0 %1549, %v1435
    %v1551 = vpop.permute.xlu0 %1550
    %1552 = vset.pattern.permute.xlu0 0
    %1553 = vperm.xlu0 %1552, %v1436
    %v1554 = vpop.permute.xlu0 %1553
    %1555 = vset.pattern.permute.xlu0 0
    %1556 = vperm.xlu0 %1555, %v1437
    %v1557 = vpop.permute.xlu0 %1556
    %1558 = vset.pattern.permute.xlu0 0
    %1559 = vperm.xlu0 %1558, %v1438
    %v1560 = vpop.permute.xlu0 %1559
    %1561 = vset.pattern.permute.xlu0 0
    %1562 = vperm.xlu0 %1561, %v1439
    %v1563 = vpop.permute.xlu0 %1562
    %1564 = vset.pattern.permute.xlu0 0
    %1565 = vperm.xlu0 %1564, %v1440
    %v1566 = vpop.permute.xlu0 %1565
    %1567 = vset.pattern.permute.xlu0 0
    %1568 = vperm.xlu0 %1567, %v1441
    %v1569 = vpop.permute.xlu0 %1568
    %1570 = vset.pattern.permute.xlu0 0
    %1571 = vperm.xlu0 %1570, %v1442
    %v1572 = vpop.permute.xlu0 %1571
    %1573 = vset.pattern.permute.xlu0 0
    %1574 = vperm.xlu0 %1573, %v1443
    %v1575 = vpop.permute.xlu0 %1574
    %1576 = vset.pattern.permute.xlu0 0
    %1577 = vperm.xlu0 %1576, %v1444
    %v1578 = vpop.permute.xlu0 %1577
    %1579 = vset.pattern.permute.xlu0 0
    %1580 = vperm.xlu0 %1579, %v1445
    %v1581 = vpop.permute.xlu0 %1580
    %1582 = vset.pattern.permute.xlu0 0
    %1583 = vperm.xlu0 %1582, %v1446
    %v1584 = vpop.permute.xlu0 %1583
    %1585 = vset.pattern.permute.xlu0 0
    %1586 = vperm.xlu0 %1585, %v1447
    %v1587 = vpop.permute.xlu0 %1586
    %1588 = vset.pattern.permute.xlu0 0
    %1589 = vperm.xlu0 %1588, %v1448
    %v1590 = vpop.permute.xlu0 %1589
    %1591 = vset.pattern.permute.xlu0 0
    %1592 = vperm.xlu0 %1591, %v1449
    %v1593 = vpop.permute.xlu0 %1592
    %1594 = vset.pattern.permute.xlu0 0
    %1595 = vperm.xlu0 %1594, %v1450
    %v1596 = vpop.permute.xlu0 %1595
    %1597 = vset.pattern.permute.xlu0 0
    %1598 = vperm.xlu0 %1597, %v1451
    %v1599 = vpop.permute.xlu0 %1598
    %1600 = vset.pattern.permute.xlu0 0
    %1601 = vperm.xlu0 %1600, %v1452
    %v1602 = vpop.permute.xlu0 %1601
    %1603 = vset.pattern.permute.xlu0 0
    %1604 = vperm.xlu0 %1603, %v1453
    %v1605 = vpop.permute.xlu0 %1604
    %1606 = vset.pattern.permute.xlu0 0
    %1607 = vperm.xlu0 %1606, %v1454
    %v1608 = vpop.permute.xlu0 %1607
    %1609 = vset.pattern.permute.xlu0 0
    %1610 = vperm.xlu0 %1609, %v1455
    %v1611 = vpop.permute.xlu0 %1610
    %1612 = vset.pattern.permute.xlu0 0
    %1613 = vperm.xlu0 %1612, %v1456
    %v1614 = vpop.permute.xlu0 %1613
    %1615 = vset.pattern.permute.xlu0 0
    %1616 = vperm.xlu0 %1615, %v1457
    %v1617 = vpop.permute.xlu0 %1616
    %1618 = vset.pattern.permute.xlu0 0
    %1619 = vperm.xlu0 %1618, %v1458
    %v1620 = vpop.permute.xlu0 %1619
    %1621 = vset.pattern.permute.xlu0 0
    %1622 = vperm.xlu0 %1621, %v1459
    %v1623 = vpop.permute.xlu0 %1622
    %1624 = vset.pattern.permute.xlu0 0
    %1625 = vperm.xlu0 %1624, %v1460
    %v1626 = vpop.permute.xlu0 %1625
    %1627 = vset.pattern.permute.xlu0 0
    %1628 = vperm.xlu0 %1627, %v1461
    %v1629 = vpop.permute.xlu0 %1628
    %1630 = vset.pattern.permute.xlu0 0
    %1631 = vperm.xlu0 %1630, %v1462
    %v1632 = vpop.permute.xlu0 %1631
    %1633 = vset.pattern.permute.xlu0 0
    %1634 = vperm.xlu0 %1633, %v1463
    %v1635 = vpop.permute.xlu0 %1634
    %1636 = vset.pattern.permute.xlu0 0
    %1637 = vperm.xlu0 %1636, %v1464
    %v1638 = vpop.permute.xlu0 %1637
    %1639 = vset.pattern.permute.xlu0 0
    %1640 = vperm.xlu0 %1639, %v1465
    %v1641 = vpop.permute.xlu0 %1640
    %1642 = vset.pattern.permute.xlu0 0
    %1643 = vperm.xlu0 %1642, %v1466
    %v1644 = vpop.permute.xlu0 %1643
    %1645 = vset.pattern.permute.xlu0 0
    %1646 = vperm.xlu0 %1645, %v1467
    %v1647 = vpop.permute.xlu0 %1646
    %1648 = vset.pattern.permute.xlu0 0
    %1649 = vperm.xlu0 %1648, %v1468
    %v1650 = vpop.permute.xlu0 %1649
    %1651 = vset.pattern.permute.xlu0 0
    %1652 = vperm.xlu0 %1651, %v1469
    %v1653 = vpop.permute.xlu0 %1652
    %1654 = vset.pattern.permute.xlu0 0
    %1655 = vperm.xlu0 %1654, %v1470
    %v1656 = vpop.permute.xlu0 %1655
    %1657 = vset.pattern.permute.xlu0 0
    %1658 = vperm.xlu0 %1657, %v1471
    %v1659 = vpop.permute.xlu0 %1658
    %1660 = vset.pattern.permute.xlu0 0
    %1661 = vperm.xlu0 %1660, %v1472
    %v1662 = vpop.permute.xlu0 %1661
    %1663 = vset.pattern.permute.xlu0 0
    %1664 = vperm.xlu0 %1663, %v1473
    %v1665 = vpop.permute.xlu0 %1664
    %vm1666 = vcmp.eq.s32.totalorder %v1409, %v1476
    %vm1667 = vcmp.eq.s32.totalorder %v1409, %v1479
    %vm1668 = vcmp.eq.s32.totalorder %v1409, %v1482
    %vm1669 = vcmp.eq.s32.totalorder %v1409, %v1485
    %vm1670 = vcmp.eq.s32.totalorder %v1409, %v1488
    %vm1671 = vcmp.eq.s32.totalorder %v1409, %v1491
    %vm1672 = vcmp.eq.s32.totalorder %v1409, %v1494
    %vm1673 = vcmp.eq.s32.totalorder %v1409, %v1497
    %vm1674 = vcmp.eq.s32.totalorder %v1409, %v1500
    %vm1675 = vcmp.eq.s32.totalorder %v1409, %v1503
    %vm1676 = vcmp.eq.s32.totalorder %v1409, %v1506
    %vm1677 = vcmp.eq.s32.totalorder %v1409, %v1509
    %vm1678 = vcmp.eq.s32.totalorder %v1409, %v1512
    %vm1679 = vcmp.eq.s32.totalorder %v1409, %v1515
    %vm1680 = vcmp.eq.s32.totalorder %v1409, %v1518
    %vm1681 = vcmp.eq.s32.totalorder %v1409, %v1521
    %vm1682 = vcmp.eq.s32.totalorder %v1409, %v1524
    %vm1683 = vcmp.eq.s32.totalorder %v1409, %v1527
    %vm1684 = vcmp.eq.s32.totalorder %v1409, %v1530
    %vm1685 = vcmp.eq.s32.totalorder %v1409, %v1533
    %vm1686 = vcmp.eq.s32.totalorder %v1409, %v1536
    %vm1687 = vcmp.eq.s32.totalorder %v1409, %v1539
    %vm1688 = vcmp.eq.s32.totalorder %v1409, %v1542
    %vm1689 = vcmp.eq.s32.totalorder %v1409, %v1545
    %vm1690 = vcmp.eq.s32.totalorder %v1409, %v1548
    %vm1691 = vcmp.eq.s32.totalorder %v1409, %v1551
    %vm1692 = vcmp.eq.s32.totalorder %v1409, %v1554
    %vm1693 = vcmp.eq.s32.totalorder %v1409, %v1557
    %vm1694 = vcmp.eq.s32.totalorder %v1409, %v1560
    %vm1695 = vcmp.eq.s32.totalorder %v1409, %v1563
    %vm1696 = vcmp.eq.s32.totalorder %v1409, %v1566
    %vm1697 = vcmp.eq.s32.totalorder %v1409, %v1569
    %vm1698 = vcmp.eq.s32.totalorder %v1409, %v1572
    %vm1699 = vcmp.eq.s32.totalorder %v1409, %v1575
    %vm1700 = vcmp.eq.s32.totalorder %v1409, %v1578
    %vm1701 = vcmp.eq.s32.totalorder %v1409, %v1581
    %vm1702 = vcmp.eq.s32.totalorder %v1409, %v1584
    %vm1703 = vcmp.eq.s32.totalorder %v1409, %v1587
    %vm1704 = vcmp.eq.s32.totalorder %v1409, %v1590
    %vm1705 = vcmp.eq.s32.totalorder %v1409, %v1593
    %vm1706 = vcmp.eq.s32.totalorder %v1409, %v1596
    %vm1707 = vcmp.eq.s32.totalorder %v1409, %v1599
    %vm1708 = vcmp.eq.s32.totalorder %v1409, %v1602
    %vm1709 = vcmp.eq.s32.totalorder %v1409, %v1605
    %vm1710 = vcmp.eq.s32.totalorder %v1409, %v1608
    %vm1711 = vcmp.eq.s32.totalorder %v1409, %v1611
    %vm1712 = vcmp.eq.s32.totalorder %v1409, %v1614
    %vm1713 = vcmp.eq.s32.totalorder %v1409, %v1617
    %vm1714 = vcmp.eq.s32.totalorder %v1409, %v1620
    %vm1715 = vcmp.eq.s32.totalorder %v1409, %v1623
    %vm1716 = vcmp.eq.s32.totalorder %v1409, %v1626
    %vm1717 = vcmp.eq.s32.totalorder %v1409, %v1629
    %vm1718 = vcmp.eq.s32.totalorder %v1409, %v1632
    %vm1719 = vcmp.eq.s32.totalorder %v1409, %v1635
    %vm1720 = vcmp.eq.s32.totalorder %v1409, %v1638
    %vm1721 = vcmp.eq.s32.totalorder %v1409, %v1641
    %vm1722 = vcmp.eq.s32.totalorder %v1409, %v1644
    %vm1723 = vcmp.eq.s32.totalorder %v1409, %v1647
    %vm1724 = vcmp.eq.s32.totalorder %v1409, %v1650
    %vm1725 = vcmp.eq.s32.totalorder %v1409, %v1653
    %vm1726 = vcmp.eq.s32.totalorder %v1409, %v1656
    %vm1727 = vcmp.eq.s32.totalorder %v1409, %v1659
    %vm1728 = vcmp.eq.s32.totalorder %v1409, %v1662
    %vm1729 = vcmp.eq.s32.totalorder %v1409, %v1665
    %v1730 = vsel %vm1666, 1, 0
    %v1731 = vsel %vm1667, 1, 0
    %v1732 = vsel %vm1668, 1, 0
    %v1733 = vsel %vm1669, 1, 0
    %v1734 = vsel %vm1670, 1, 0
    %v1735 = vsel %vm1671, 1, 0
    %v1736 = vsel %vm1672, 1, 0
    %v1737 = vsel %vm1673, 1, 0
    %v1738 = vsel %vm1674, 1, 0
    %v1739 = vsel %vm1675, 1, 0
    %v1740 = vsel %vm1676, 1, 0
    %v1741 = vsel %vm1677, 1, 0
    %v1742 = vsel %vm1678, 1, 0
    %v1743 = vsel %vm1679, 1, 0
    %v1744 = vsel %vm1680, 1, 0
    %v1745 = vsel %vm1681, 1, 0
    %v1746 = vsel %vm1682, 1, 0
    %v1747 = vsel %vm1683, 1, 0
    %v1748 = vsel %vm1684, 1, 0
    %v1749 = vsel %vm1685, 1, 0
    %v1750 = vsel %vm1686, 1, 0
    %v1751 = vsel %vm1687, 1, 0
    %v1752 = vsel %vm1688, 1, 0
    %v1753 = vsel %vm1689, 1, 0
    %v1754 = vsel %vm1690, 1, 0
    %v1755 = vsel %vm1691, 1, 0
    %v1756 = vsel %vm1692, 1, 0
    %v1757 = vsel %vm1693, 1, 0
    %v1758 = vsel %vm1694, 1, 0
    %v1759 = vsel %vm1695, 1, 0
    %v1760 = vsel %vm1696, 1, 0
    %v1761 = vsel %vm1697, 1, 0
    %v1762 = vsel %vm1698, 1, 0
    %v1763 = vsel %vm1699, 1, 0
    %v1764 = vsel %vm1700, 1, 0
    %v1765 = vsel %vm1701, 1, 0
    %v1766 = vsel %vm1702, 1, 0
    %v1767 = vsel %vm1703, 1, 0
    %v1768 = vsel %vm1704, 1, 0
    %v1769 = vsel %vm1705, 1, 0
    %v1770 = vsel %vm1706, 1, 0
    %v1771 = vsel %vm1707, 1, 0
    %v1772 = vsel %vm1708, 1, 0
    %v1773 = vsel %vm1709, 1, 0
    %v1774 = vsel %vm1710, 1, 0
    %v1775 = vsel %vm1711, 1, 0
    %v1776 = vsel %vm1712, 1, 0
    %v1777 = vsel %vm1713, 1, 0
    %v1778 = vsel %vm1714, 1, 0
    %v1779 = vsel %vm1715, 1, 0
    %v1780 = vsel %vm1716, 1, 0
    %v1781 = vsel %vm1717, 1, 0
    %v1782 = vsel %vm1718, 1, 0
    %v1783 = vsel %vm1719, 1, 0
    %v1784 = vsel %vm1720, 1, 0
    %v1785 = vsel %vm1721, 1, 0
    %v1786 = vsel %vm1722, 1, 0
    %v1787 = vsel %vm1723, 1, 0
    %v1788 = vsel %vm1724, 1, 0
    %v1789 = vsel %vm1725, 1, 0
    %v1790 = vsel %vm1726, 1, 0
    %v1791 = vsel %vm1727, 1, 0
    %v1792 = vsel %vm1728, 1, 0
    %v1793 = vsel %vm1729, 1, 0
    %v1794 = vcvt.s32.f32 %v1730
    %v1795 = vcvt.s32.f32 %v1731
    %v1796 = vcvt.s32.f32 %v1732
    %v1797 = vcvt.s32.f32 %v1733
    %v1798 = vcvt.s32.f32 %v1734
    %v1799 = vcvt.s32.f32 %v1735
    %v1800 = vcvt.s32.f32 %v1736
    %v1801 = vcvt.s32.f32 %v1737
    %v1802 = vcvt.s32.f32 %v1738
    %v1803 = vcvt.s32.f32 %v1739
    %v1804 = vcvt.s32.f32 %v1740
    %v1805 = vcvt.s32.f32 %v1741
    %v1806 = vcvt.s32.f32 %v1742
    %v1807 = vcvt.s32.f32 %v1743
    %v1808 = vcvt.s32.f32 %v1744
    %v1809 = vcvt.s32.f32 %v1745
    %v1810 = vcvt.s32.f32 %v1746
    %v1811 = vcvt.s32.f32 %v1747
    %v1812 = vcvt.s32.f32 %v1748
    %v1813 = vcvt.s32.f32 %v1749
    %v1814 = vcvt.s32.f32 %v1750
    %v1815 = vcvt.s32.f32 %v1751
    %v1816 = vcvt.s32.f32 %v1752
    %v1817 = vcvt.s32.f32 %v1753
    %v1818 = vcvt.s32.f32 %v1754
    %v1819 = vcvt.s32.f32 %v1755
    %v1820 = vcvt.s32.f32 %v1756
    %v1821 = vcvt.s32.f32 %v1757
    %v1822 = vcvt.s32.f32 %v1758
    %v1823 = vcvt.s32.f32 %v1759
    %v1824 = vcvt.s32.f32 %v1760
    %v1825 = vcvt.s32.f32 %v1761
    %v1826 = vcvt.s32.f32 %v1762
    %v1827 = vcvt.s32.f32 %v1763
    %v1828 = vcvt.s32.f32 %v1764
    %v1829 = vcvt.s32.f32 %v1765
    %v1830 = vcvt.s32.f32 %v1766
    %v1831 = vcvt.s32.f32 %v1767
    %v1832 = vcvt.s32.f32 %v1768
    %v1833 = vcvt.s32.f32 %v1769
    %v1834 = vcvt.s32.f32 %v1770
    %v1835 = vcvt.s32.f32 %v1771
    %v1836 = vcvt.s32.f32 %v1772
    %v1837 = vcvt.s32.f32 %v1773
    %v1838 = vcvt.s32.f32 %v1774
    %v1839 = vcvt.s32.f32 %v1775
    %v1840 = vcvt.s32.f32 %v1776
    %v1841 = vcvt.s32.f32 %v1777
    %v1842 = vcvt.s32.f32 %v1778
    %v1843 = vcvt.s32.f32 %v1779
    %v1844 = vcvt.s32.f32 %v1780
    %v1845 = vcvt.s32.f32 %v1781
    %v1846 = vcvt.s32.f32 %v1782
    %v1847 = vcvt.s32.f32 %v1783
    %v1848 = vcvt.s32.f32 %v1784
    %v1849 = vcvt.s32.f32 %v1785
    %v1850 = vcvt.s32.f32 %v1786
    %v1851 = vcvt.s32.f32 %v1787
    %v1852 = vcvt.s32.f32 %v1788
    %v1853 = vcvt.s32.f32 %v1789
    %v1854 = vcvt.s32.f32 %v1790
    %v1855 = vcvt.s32.f32 %v1791
    %v1856 = vcvt.s32.f32 %v1792
    %v1857 = vcvt.s32.f32 %v1793
    %v1858 = vld [vmem:[#allocation2] sm:$0xf]
    %1859 = vxpose.xlu0.b32.start [1/16] %v1025, 128
    %1860 = vxpose.xlu0.b32.cont [2/16] %v1030, 128
    %1861 = vxpose.xlu0.b32.cont [3/16] %v1035, 128
    %1862 = vxpose.xlu0.b32.cont [4/16] %v1040, 128
    %1863 = vxpose.xlu0.b32.cont [5/16] %v1045, 128
    %1864 = vxpose.xlu0.b32.cont [6/16] %v1050, 128
    %1865 = vxpose.xlu0.b32.cont [7/16] %v1055, 128
    %1866 = vxpose.xlu0.b32.cont [8/16] %v1060, 128
    %1867 = vxpose.xlu0.b32.cont [9/16] %v1065, 128
    %1868 = vxpose.xlu0.b32.cont [10/16] %v1070, 128
    %1869 = vxpose.xlu0.b32.cont [11/16] %v1075, 128
    %1870 = vxpose.xlu0.b32.cont [12/16] %v1080, 128
    %1871 = vxpose.xlu0.b32.cont [13/16] %v1085, 128
    %1872 = vxpose.xlu0.b32.cont [14/16] %v1090, 128
    %1873 = vxpose.xlu0.b32.cont [15/16] %v1095, 128
    %1874 = vxpose.xlu0.b32.end [16/16] %v1100, 128
    %v1875 = vpop.trf.xlu0
    %v1876 = vpop.trf.xlu0
    %v1877 = vpop.trf.xlu0
    %v1878 = vpop.trf.xlu0
    %v1879 = vpop.trf.xlu0
    %v1880 = vpop.trf.xlu0
    %v1881 = vpop.trf.xlu0
    %v1882 = vpop.trf.xlu0
    %v1883 = vpop.trf.xlu0
    %v1884 = vpop.trf.xlu0
    %v1885 = vpop.trf.xlu0
    %v1886 = vpop.trf.xlu0
    %v1887 = vpop.trf.xlu0
    %v1888 = vpop.trf.xlu0
    %v1889 = vpop.trf.xlu0
    %v1890 = vpop.trf.xlu0
    %1891 = vxpose.xlu0.b32.start [1/16] %v1105, 128
    %1892 = vxpose.xlu0.b32.cont [2/16] %v1110, 128
    %1893 = vxpose.xlu0.b32.cont [3/16] %v1115, 128
    %1894 = vxpose.xlu0.b32.cont [4/16] %v1120, 128
    %1895 = vxpose.xlu0.b32.cont [5/16] %v1125, 128
    %1896 = vxpose.xlu0.b32.cont [6/16] %v1130, 128
    %1897 = vxpose.xlu0.b32.cont [7/16] %v1135, 128
    %1898 = vxpose.xlu0.b32.cont [8/16] %v1140, 128
    %1899 = vxpose.xlu0.b32.cont [9/16] %v1145, 128
    %1900 = vxpose.xlu0.b32.cont [10/16] %v1150, 128
    %1901 = vxpose.xlu0.b32.cont [11/16] %v1155, 128
    %1902 = vxpose.xlu0.b32.cont [12/16] %v1160, 128
    %1903 = vxpose.xlu0.b32.cont [13/16] %v1165, 128
    %1904 = vxpose.xlu0.b32.cont [14/16] %v1170, 128
    %1905 = vxpose.xlu0.b32.cont [15/16] %v1175, 128
    %1906 = vxpose.xlu0.b32.end [16/16] %v1180, 128
    %v1907 = vpop.trf.xlu0
    %v1908 = vpop.trf.xlu0
    %v1909 = vpop.trf.xlu0
    %v1910 = vpop.trf.xlu0
    %v1911 = vpop.trf.xlu0
    %v1912 = vpop.trf.xlu0
    %v1913 = vpop.trf.xlu0
    %v1914 = vpop.trf.xlu0
    %v1915 = vpop.trf.xlu0
    %v1916 = vpop.trf.xlu0
    %v1917 = vpop.trf.xlu0
    %v1918 = vpop.trf.xlu0
    %v1919 = vpop.trf.xlu0
    %v1920 = vpop.trf.xlu0
    %v1921 = vpop.trf.xlu0
    %v1922 = vpop.trf.xlu0
    %1923 = vxpose.xlu0.b32.start [1/16] %v1185, 128
    %1924 = vxpose.xlu0.b32.cont [2/16] %v1190, 128
    %1925 = vxpose.xlu0.b32.cont [3/16] %v1195, 128
    %1926 = vxpose.xlu0.b32.cont [4/16] %v1200, 128
    %1927 = vxpose.xlu0.b32.cont [5/16] %v1205, 128
    %1928 = vxpose.xlu0.b32.cont [6/16] %v1210, 128
    %1929 = vxpose.xlu0.b32.cont [7/16] %v1215, 128
    %1930 = vxpose.xlu0.b32.cont [8/16] %v1220, 128
    %1931 = vxpose.xlu0.b32.cont [9/16] %v1225, 128
    %1932 = vxpose.xlu0.b32.cont [10/16] %v1230, 128
    %1933 = vxpose.xlu0.b32.cont [11/16] %v1235, 128
    %1934 = vxpose.xlu0.b32.cont [12/16] %v1240, 128
    %1935 = vxpose.xlu0.b32.cont [13/16] %v1245, 128
    %1936 = vxpose.xlu0.b32.cont [14/16] %v1250, 128
    %1937 = vxpose.xlu0.b32.cont [15/16] %v1255, 128
    %1938 = vxpose.xlu0.b32.end [16/16] %v1260, 128
    %v1939 = vpop.trf.xlu0
    %v1940 = vpop.trf.xlu0
    %v1941 = vpop.trf.xlu0
    %v1942 = vpop.trf.xlu0
    %v1943 = vpop.trf.xlu0
    %v1944 = vpop.trf.xlu0
    %v1945 = vpop.trf.xlu0
    %v1946 = vpop.trf.xlu0
    %v1947 = vpop.trf.xlu0
    %v1948 = vpop.trf.xlu0
    %v1949 = vpop.trf.xlu0
    %v1950 = vpop.trf.xlu0
    %v1951 = vpop.trf.xlu0
    %v1952 = vpop.trf.xlu0
    %v1953 = vpop.trf.xlu0
    %v1954 = vpop.trf.xlu0
    %1955 = vxpose.xlu0.b32.start [1/16] %v1265, 128
    %1956 = vxpose.xlu0.b32.cont [2/16] %v1270, 128
    %1957 = vxpose.xlu0.b32.cont [3/16] %v1275, 128
    %1958 = vxpose.xlu0.b32.cont [4/16] %v1280, 128
    %1959 = vxpose.xlu0.b32.cont [5/16] %v1285, 128
    %1960 = vxpose.xlu0.b32.cont [6/16] %v1290, 128
    %1961 = vxpose.xlu0.b32.cont [7/16] %v1295, 128
    %1962 = vxpose.xlu0.b32.cont [8/16] %v1300, 128
    %1963 = vxpose.xlu0.b32.cont [9/16] %v1305, 128
    %1964 = vxpose.xlu0.b32.cont [10/16] %v1310, 128
    %1965 = vxpose.xlu0.b32.cont [11/16] %v1315, 128
    %1966 = vxpose.xlu0.b32.cont [12/16] %v1320, 128
    %1967 = vxpose.xlu0.b32.cont [13/16] %v1325, 128
    %1968 = vxpose.xlu0.b32.cont [14/16] %v1330, 128
    %1969 = vxpose.xlu0.b32.cont [15/16] %v1335, 128
    %1970 = vxpose.xlu0.b32.end [16/16] %v1340, 128
    %v1971 = vpop.trf.xlu0
    %v1972 = vpop.trf.xlu0
    %v1973 = vpop.trf.xlu0
    %v1974 = vpop.trf.xlu0
    %v1975 = vpop.trf.xlu0
    %v1976 = vpop.trf.xlu0
    %v1977 = vpop.trf.xlu0
    %v1978 = vpop.trf.xlu0
    %v1979 = vpop.trf.xlu0
    %v1980 = vpop.trf.xlu0
    %v1981 = vpop.trf.xlu0
    %v1982 = vpop.trf.xlu0
    %v1983 = vpop.trf.xlu0
    %v1984 = vpop.trf.xlu0
    %v1985 = vpop.trf.xlu0
    %v1986 = vpop.trf.xlu0
    %1987 = vmatprep.subr.mxu0 0.0
    %1988 = vmatpush1.msra.mxu0 %v1809
    %1989 = vmatprep.subr.mxu0 0.0
    %1990 = vmatpush1.msra.mxu0 %v1808
    %1991 = vmatprep.subr.mxu0 0.0
    %1992 = vmatpush1.msra.mxu0 %v1807
    %1993 = vmatprep.subr.mxu0 0.0
    %1994 = vmatpush1.msra.mxu0 %v1806
    %1995 = vmatprep.subr.mxu0 0.0
    %1996 = vmatpush1.msra.mxu0 %v1805
    %1997 = vmatprep.subr.mxu0 0.0
    %1998 = vmatpush1.msra.mxu0 %v1804
    %1999 = vmatprep.subr.mxu0 0.0
    %2000 = vmatpush1.msra.mxu0 %v1803
    %2001 = vmatprep.subr.mxu0 0.0
    %2002 = vmatpush1.msra.mxu0 %v1802
    %2003 = vmatprep.subr.mxu0 0.0
    %2004 = vmatpush1.msra.mxu0 %v1801
    %2005 = vmatprep.subr.mxu0 0.0
    %2006 = vmatpush1.msra.mxu0 %v1800
    %2007 = vmatprep.subr.mxu0 0.0
    %2008 = vmatpush1.msra.mxu0 %v1799
    %2009 = vmatprep.subr.mxu0 0.0
    %2010 = vmatpush1.msra.mxu0 %v1798
    %2011 = vmatprep.subr.mxu0 0.0
    %2012 = vmatpush1.msra.mxu0 %v1797
    %2013 = vmatprep.subr.mxu0 0.0
    %2014 = vmatpush1.msra.mxu0 %v1796
    %2015 = vmatprep.subr.mxu0 0.0
    %2016 = vmatpush1.msra.mxu0 %v1795
    %2017 = vmatprep.subr.mxu0 0.0
    %2018 = vmatpush1.msra.mxu0 %v1794
    %2019 = vmatprep.subr.mxu0 0.0
    %2020 = vmatpush2.msra.mxu0 %v1825
    %2021 = vmatprep.subr.mxu0 0.0
    %2022 = vmatpush2.msra.mxu0 %v1824
    %2023 = vmatprep.subr.mxu0 0.0
    %2024 = vmatpush2.msra.mxu0 %v1823
    %2025 = vmatprep.subr.mxu0 0.0
    %2026 = vmatpush2.msra.mxu0 %v1822
    %2027 = vmatprep.subr.mxu0 0.0
    %2028 = vmatpush2.msra.mxu0 %v1821
    %2029 = vmatprep.subr.mxu0 0.0
    %2030 = vmatpush2.msra.mxu0 %v1820
    %2031 = vmatprep.subr.mxu0 0.0
    %2032 = vmatpush2.msra.mxu0 %v1819
    %2033 = vmatprep.subr.mxu0 0.0
    %2034 = vmatpush2.msra.mxu0 %v1818
    %2035 = vmatprep.subr.mxu0 0.0
    %2036 = vmatpush2.msra.mxu0 %v1817
    %2037 = vmatprep.subr.mxu0 0.0
    %2038 = vmatpush2.msra.mxu0 %v1816
    %2039 = vmatprep.subr.mxu0 0.0
    %2040 = vmatpush2.msra.mxu0 %v1815
    %2041 = vmatprep.subr.mxu0 0.0
    %2042 = vmatpush2.msra.mxu0 %v1814
    %2043 = vmatprep.subr.mxu0 0.0
    %2044 = vmatpush2.msra.mxu0 %v1813
    %2045 = vmatprep.subr.mxu0 0.0
    %2046 = vmatpush2.msra.mxu0 %v1812
    %2047 = vmatprep.subr.mxu0 0.0
    %2048 = vmatpush2.msra.mxu0 %v1811
    %2049 = vmatprep.subr.mxu0 0.0
    %2050 = vmatpush2.msra.mxu0 %v1810
    %2051 = vmatprep.mubr.f32.mxu0 %v1907
    %2052 = vmatmul.mubr.f32.gmra.mxu0 %v1875
    %v2053 = vpop.f32.mrf.mxu0
    %v2054 = vadd.f32 0.0, %v2053
    %v2055 = vpop.f32.mrf.mxu0
    %2056 = vdwg.mxu0
    %2057 = vmatprep.subr.mxu0 0.0
    %2058 = vmatpush1.msra.mxu0 %v1841
    %2059 = vmatprep.subr.mxu0 0.0
    %2060 = vmatpush1.msra.mxu0 %v1840
    %2061 = vmatprep.subr.mxu0 0.0
    %2062 = vmatpush1.msra.mxu0 %v1839
    %2063 = vmatprep.subr.mxu0 0.0
    %2064 = vmatpush1.msra.mxu0 %v1838
    %2065 = vmatprep.subr.mxu0 0.0
    %2066 = vmatpush1.msra.mxu0 %v1837
    %2067 = vmatprep.subr.mxu0 0.0
    %2068 = vmatpush1.msra.mxu0 %v1836
    %2069 = vmatprep.subr.mxu0 0.0
    %2070 = vmatpush1.msra.mxu0 %v1835
    %2071 = vmatprep.subr.mxu0 0.0
    %2072 = vmatpush1.msra.mxu0 %v1834
    %2073 = vmatprep.subr.mxu0 0.0
    %2074 = vmatpush1.msra.mxu0 %v1833
    %2075 = vmatprep.subr.mxu0 0.0
    %2076 = vmatpush1.msra.mxu0 %v1832
    %2077 = vmatprep.subr.mxu0 0.0
    %2078 = vmatpush1.msra.mxu0 %v1831
    %2079 = vmatprep.subr.mxu0 0.0
    %2080 = vmatpush1.msra.mxu0 %v1830
    %2081 = vmatprep.subr.mxu0 0.0
    %2082 = vmatpush1.msra.mxu0 %v1829
    %2083 = vmatprep.subr.mxu0 0.0
    %2084 = vmatpush1.msra.mxu0 %v1828
    %2085 = vmatprep.subr.mxu0 0.0
    %2086 = vmatpush1.msra.mxu0 %v1827
    %2087 = vmatprep.subr.mxu0 0.0
    %2088 = vmatpush1.msra.mxu0 %v1826
    %2089 = vmatprep.subr.mxu0 0.0
    %2090 = vmatpush2.msra.mxu0 %v1857
    %2091 = vmatprep.subr.mxu0 0.0
    %2092 = vmatpush2.msra.mxu0 %v1856
    %2093 = vmatprep.subr.mxu0 0.0
    %2094 = vmatpush2.msra.mxu0 %v1855
    %2095 = vmatprep.subr.mxu0 0.0
    %2096 = vmatpush2.msra.mxu0 %v1854
    %2097 = vmatprep.subr.mxu0 0.0
    %2098 = vmatpush2.msra.mxu0 %v1853
    %2099 = vmatprep.subr.mxu0 0.0
    %2100 = vmatpush2.msra.mxu0 %v1852
    %2101 = vmatprep.subr.mxu0 0.0
    %2102 = vmatpush2.msra.mxu0 %v1851
    %2103 = vmatprep.subr.mxu0 0.0
    %2104 = vmatpush2.msra.mxu0 %v1850
    %2105 = vmatprep.subr.mxu0 0.0
    %2106 = vmatpush2.msra.mxu0 %v1849
    %2107 = vmatprep.subr.mxu0 0.0
    %2108 = vmatpush2.msra.mxu0 %v1848
    %2109 = vmatprep.subr.mxu0 0.0
    %2110 = vmatpush2.msra.mxu0 %v1847
    %2111 = vmatprep.subr.mxu0 0.0
    %2112 = vmatpush2.msra.mxu0 %v1846
    %2113 = vmatprep.subr.mxu0 0.0
    %2114 = vmatpush2.msra.mxu0 %v1845
    %2115 = vmatprep.subr.mxu0 0.0
    %2116 = vmatpush2.msra.mxu0 %v1844
    %2117 = vmatprep.subr.mxu0 0.0
    %2118 = vmatpush2.msra.mxu0 %v1843
    %2119 = vmatprep.subr.mxu0 0.0
    %2120 = vmatpush2.msra.mxu0 %v1842
    %2121 = vmatprep.mubr.f32.mxu0 %v1971
    %2122 = vmatmul.mubr.f32.gmra.mxu0 %v1939
    %v2123 = vpop.f32.mrf.mxu0
    %v2124 = vadd.f32 %v2054, %v2123
    %v2125 = vpop.f32.mrf.mxu0
    %2126 = vdwg.mxu0
    %v2127 = vadd.f32 %v1858, %v2124
    %vm2128 = vcmask 60416
    %2129 = vst.msk [vmem:[#allocation2] sm:$0xf] %vm2128, %v2127
    // Predicated region
    $region34: #{tpu_custom_call.1} parent=1 // pred_check
      %p2130 = pneg %p29
    $region35: #{tpu_custom_call.1} parent=1 // pred_check_branch
      %2132 = sbr.rel (%p2130) target = $region37
    $region36: #{tpu_custom_call.1} parent=1 // pred_region
      %v2133 = vld [vmem:[#allocation2] sm:$0xf]
      %v2134 = vld [vmem:[%s2] sm:$0x1]
      %v2136 = vlaneseq
      %v2137 = vshrl.u32 %v2136, 7
      %v2138 = vsub.s32 0, %v2137
      %v2139 = vrot.slane %v2134, %v2138
      %v2141 = vmul.f32 %v2133, %v2139
      %2142 = vst.msk [vmem:[#allocation3] sm:$0xf] %vm2128, %v2141
    $region37: #{tpu_custom_call.1} parent=1 // pred_fallthru
      _
    // Predicated region
    $region38: #{tpu_custom_call.1} parent=1 // pred_check
      _
    $region39: #{tpu_custom_call.1} parent=1 // pred_check_branch
      %2144 = sbr.rel (0) target = $region41
    $region40: #{tpu_custom_call.1} parent=1 // pred_region
      _
    $region41: #{tpu_custom_call.1} parent=1 // pred_fallthru
      _
    // Predicated region
    $region42: #{tpu_custom_call.1} parent=1 // pred_check
      _
    $region43: #{tpu_custom_call.1} parent=1 // pred_check_branch
      %2146 = sbr.rel (0) target = $region45
    $region44: #{tpu_custom_call.1} parent=1 // pred_region
      %s2148 = ssub.s32 64, 64
      %2149 = vsyncadd [#allocation4], %s2148
      %s2151 = sshll.u32 [#allocation3], 4
      %s2152 = int_to_ptr.vmem [resolvable:$true] %s2151
      %2154 = dma.vmem_to_hbm [thread:$0]  %s2152, 64, %s8, [#allocation4]
    $region45: #{tpu_custom_call.1} parent=1 // pred_fallthru
      _
    // Predicated region
    $region46: #{tpu_custom_call.1} parent=1 // pred_check
      _
    $region47: #{tpu_custom_call.1} parent=1 // pred_check_branch
      %2156 = sbr.rel (0) target = $region49
    $region48: #{tpu_custom_call.1} parent=1 // pred_region
      _
    $region49: #{tpu_custom_call.1} parent=1 // pred_fallthru
      _
    // Predicated region
    $region50: #{tpu_custom_call.1} parent=1 // pred_check
      _
    $region51: #{tpu_custom_call.1} parent=1 // pred_check_branch
      %2158 = sbr.rel (0) target = $region53
    $region52: #{tpu_custom_call.1} parent=1 // pred_region
      %2159 = dma.done [#allocation4], 64
    $region53: #{tpu_custom_call.1} parent=1 // pred_fallthru
      _
    %2160 = vsyncpa [#allocation4], 1

</llo_original>
